<compile_context>
chip_gen: v5e
topology: v5e:2x2
jax: 0.10.0
libtpu: 0.0.40
codegen_flags: <defaults>
</compile_context>

<pallas_src>
import jax
import jax.numpy as jnp
from jax.experimental import pallas as pl
from jax.experimental.pallas import tpu as pltpu


def _round_up(x, m):
    return (x + m - 1) // m * m


def _mlp_kernel(x_ref, w1_ref, b1_ref, w2_ref, b2_ref, o_ref):
    # fc1: (tm, K) @ (K, H) on the MXU, f32 accumulation, f32 bias add.
    h = jnp.dot(x_ref[...], w1_ref[...],
                preferred_element_type=jnp.float32) + b1_ref[...]
    # ReLU
    h = jnp.maximum(h, 0.0)
    # dropout -> identity (inference)
    # fc2: cast the activation back to the (bf16) weight dtype so the MXU runs
    # at native bf16 throughput; accumulation stays f32.
    y = jnp.dot(h.astype(w2_ref.dtype), w2_ref[...],
                preferred_element_type=jnp.float32) + b2_ref[...]
    o_ref[...] = y.astype(o_ref.dtype)


def movie_embedding_projector(x, w1, b1, w2, b2, *, tm=256, use_bf16=True):
    """Fused fc1 -> ReLU -> (dropout = id) -> fc2.

    x:  (B, input_dim) f32
    w1: (input_dim, hidden)   b1: (1, hidden)   (transposed vs PyTorch Linear)
    w2: (hidden, output)      b2: (1, output)
    Returns (B, output) in x.dtype.
    """
    B, input_dim = x.shape
    hidden_dim = w1.shape[1]
    output_dim = w2.shape[1]
    out_dtype = x.dtype

    b1 = b1.reshape(1, hidden_dim).astype(jnp.float32)
    b2 = b2.reshape(1, output_dim).astype(jnp.float32)

    # ---- lane-dense K: pad input_dim up to a multiple of 128 with zeros ----
    K = _round_up(input_dim, 128)
    if K != input_dim:
        x = jnp.pad(x, ((0, 0), (0, K - input_dim)))
        w1 = jnp.pad(w1, ((0, K - input_dim), (0, 0)))

    # ---- batch tiling: MXU-sized tiles, ragged tail handled by zero-pad ----
    # Never over-pad a tiny batch: the tile never exceeds the sublane-rounded
    # batch itself (so B=8 still runs as a single small block).
    tm = _round_up(max(tm, 8), 8)
    tm_eff = min(tm, _round_up(B, 8))
    B_pad = _round_up(B, tm_eff)
    if B_pad != B:
        x = jnp.pad(x, ((0, B_pad - B), (0, 0)))

    # ---- bf16 matmul operands; accumulation / bias adds stay f32 ----
    if use_bf16:
        x = x.astype(jnp.bfloat16)
        w1 = w1.astype(jnp.bfloat16)
        w2 = w2.astype(jnp.bfloat16)

    grid = (B_pad // tm_eff,)

    cost = pl.CostEstimate(
        flops=2 * B_pad * (K * hidden_dim + hidden_dim * output_dim),
        transcendentals=0,
        bytes_accessed=(x.size * x.dtype.itemsize
                        + w1.size * w1.dtype.itemsize
                        + w2.size * w2.dtype.itemsize
                        + b1.size * 4 + b2.size * 4
                        + B_pad * output_dim * jnp.dtype(out_dtype).itemsize),
    )

    out = pl.pallas_call(
        _mlp_kernel,
        out_shape=jax.ShapeDtypeStruct((B_pad, output_dim), out_dtype),
        grid_spec=pltpu.PrefetchScalarGridSpec(
            num_scalar_prefetch=0,
            grid=grid,
            in_specs=[
                # batch-tiled input (lane-dense: K is a multiple of 128)
                pl.BlockSpec((tm_eff, K), lambda i: (i, 0)),
                # weights / biases: same block every step -> stay VMEM-resident
                pl.BlockSpec((K, hidden_dim), lambda i: (0, 0)),
                pl.BlockSpec((1, hidden_dim), lambda i: (0, 0)),
                pl.BlockSpec((hidden_dim, output_dim), lambda i: (0, 0)),
                pl.BlockSpec((1, output_dim), lambda i: (0, 0)),
            ],
            out_specs=pl.BlockSpec((tm_eff, output_dim), lambda i: (i, 0)),
        ),
        compiler_params=pltpu.CompilerParams(
            dimension_semantics=("parallel",)),
        cost_estimate=cost,
    )(x, w1, b1, w2, b2)

    return out[:B]


def _ref_forward(x, w1, b1, w2, b2):
    h = jnp.maximum(x @ w1 + b1, 0.0)
    return h @ w2 + b2


if __name__ == "__main__":
    # Small shapes consistent with the module (hidden=256, output=768 defaults).
    B = 200           # intentionally ragged vs the 128-row tile
    input_dim = 32
    hidden_dim = 256
    output_dim = 768

    key = jax.random.PRNGKey(0)
    kx, k1, kb1, k2, kb2 = jax.random.split(key, 5)

    x = jax.random.normal(kx, (B, input_dim), dtype=jnp.float32)

    # Deterministic param init (PyTorch-Linear-like uniform bounds).
    bound1 = 1.0 / (input_dim ** 0.5)
    w1 = jax.random.uniform(k1, (input_dim, hidden_dim), jnp.float32,
                            -bound1, bound1)
    b1 = jax.random.uniform(kb1, (1, hidden_dim), jnp.float32,
                            -bound1, bound1)
    bound2 = 1.0 / (hidden_dim ** 0.5)
    w2 = jax.random.uniform(k2, (hidden_dim, output_dim), jnp.float32,
                            -bound2, bound2)
    b2 = jax.random.uniform(kb2, (1, output_dim), jnp.float32,
                            -bound2, bound2)

    ref = _ref_forward(x, w1, b1, w2, b2)

    # bf16-operand fast path (default): loose tolerance vs f32 reference.
    out_bf16 = movie_embedding_projector(x, w1, b1, w2, b2, tm=128,
                                         use_bf16=True)
    out_bf16 = jax.block_until_ready(out_bf16)
    assert out_bf16.shape == (B, output_dim)
    assert jnp.allclose(out_bf16, ref, atol=2e-2, rtol=2e-2)

    # f32 path: bit-level-close to the reference.
    out_f32 = movie_embedding_projector(x, w1, b1, w2, b2, tm=128,
                                        use_bf16=False)
    out_f32 = jax.block_until_ready(out_f32)
    assert out_f32.shape == (B, output_dim)
    assert jnp.allclose(out_f32, ref, atol=1e-4, rtol=1e-4)

    print("KERNEL_OK")
</pallas_src>

<mosaic_0001>
module attributes {stable_mosaic.version = 11 : i64} {
  func.func @_mlp_kernel(%arg0: i32, %arg1: memref<128x128xbf16, #tpu.memory_space<vmem>>, %arg2: memref<128x256xbf16, #tpu.memory_space<vmem>>, %arg3: memref<1x256xf32, #tpu.memory_space<vmem>>, %arg4: memref<256x768xbf16, #tpu.memory_space<vmem>>, %arg5: memref<1x768xf32, #tpu.memory_space<vmem>>, %arg6: memref<128x768xf32, #tpu.memory_space<vmem>>) attributes {dimension_semantics = [#tpu.dimension_semantics<parallel>], iteration_bounds = array<i64: 2>, scalar_prefetch = 0 : i64, scratch_operands = 0 : i64, tpu.core_type = #tpu.core_type<tc>, window_params = [{transform_indices = @transform_0, window_bounds = array<i64: 128, 128>}, {pipeline_mode = #tpu.pipeline_mode<synchronous>, transform_indices = @transform_1, window_bounds = array<i64: 128, 256>}, {pipeline_mode = #tpu.pipeline_mode<synchronous>, transform_indices = @transform_2, window_bounds = array<i64: 1, 256>}, {pipeline_mode = #tpu.pipeline_mode<synchronous>, transform_indices = @transform_3, window_bounds = array<i64: 256, 768>}, {pipeline_mode = #tpu.pipeline_mode<synchronous>, transform_indices = @transform_4, window_bounds = array<i64: 1, 768>}, {transform_indices = @transform_5, window_bounds = array<i64: 128, 768>}]} {
    %c0 = arith.constant 0 : index
    %c0_0 = arith.constant 0 : index
    %0 = vector.load %arg1[%c0, %c0_0] : memref<128x128xbf16, #tpu.memory_space<vmem>>, vector<128x128xbf16>
    %c0_1 = arith.constant 0 : index
    %c0_2 = arith.constant 0 : index
    %1 = vector.load %arg2[%c0_1, %c0_2] : memref<128x256xbf16, #tpu.memory_space<vmem>>, vector<128x256xbf16>
    %cst = arith.constant dense<0.000000e+00> : vector<128x256xf32>
    %2 = tpu.matmul %0, %1, %cst {dimension_numbers = #tpu.dot_dimension_numbers<[1], [0], [0], [1], [0, 0, 1, 1], [], []>} : vector<128x128xbf16>, vector<128x256xbf16>, vector<128x256xf32> -> vector<128x256xf32>
    %c0_3 = arith.constant 0 : index
    %c0_4 = arith.constant 0 : index
    %3 = vector.load %arg3[%c0_3, %c0_4] : memref<1x256xf32, #tpu.memory_space<vmem>>, vector<1x256xf32>
    %4 = vector.broadcast %3 : vector<1x256xf32> to vector<128x256xf32>
    %5 = arith.addf %2, %4 : vector<128x256xf32>
    %cst_5 = arith.constant 0.000000e+00 : f32
    %6 = vector.broadcast %cst_5 : f32 to vector<128x256xf32>
    %7 = arith.maximumf %5, %6 : vector<128x256xf32>
    %8 = arith.truncf %7 : vector<128x256xf32> to vector<128x256xbf16>
    %c0_6 = arith.constant 0 : index
    %c0_7 = arith.constant 0 : index
    %9 = vector.load %arg4[%c0_6, %c0_7] : memref<256x768xbf16, #tpu.memory_space<vmem>>, vector<256x768xbf16>
    %cst_8 = arith.constant dense<0.000000e+00> : vector<128x768xf32>
    %10 = tpu.matmul %8, %9, %cst_8 {dimension_numbers = #tpu.dot_dimension_numbers<[1], [0], [0], [1], [0, 0, 1, 1], [], []>} : vector<128x256xbf16>, vector<256x768xbf16>, vector<128x768xf32> -> vector<128x768xf32>
    %c0_9 = arith.constant 0 : index
    %c0_10 = arith.constant 0 : index
    %11 = vector.load %arg5[%c0_9, %c0_10] : memref<1x768xf32, #tpu.memory_space<vmem>>, vector<1x768xf32>
    %12 = vector.broadcast %11 : vector<1x768xf32> to vector<128x768xf32>
    %13 = arith.addf %10, %12 : vector<128x768xf32>
    %c0_11 = arith.constant 0 : index
    %c0_12 = arith.constant 0 : index
    %14 = vector.load %arg6[%c0_11, %c0_12] : memref<128x768xf32, #tpu.memory_space<vmem>>, vector<128x768xf32>
    tpu.vector_store %arg6[%c0_11, %c0_12], %13 {strides = array<i32>} : memref<128x768xf32, #tpu.memory_space<vmem>>, vector<128x768xf32>,
    return
  }
  func.func @transform_0(%arg0: i32) -> (i32, i32) {
    %c0_i32 = arith.constant 0 : i32
    %c0_i32_0 = arith.constant 0 : i32
    return %arg0, %c0_i32 : i32, i32
  }
  func.func @transform_1(%arg0: i32) -> (i32, i32) {
    %c0_i32 = arith.constant 0 : i32
    %c0_i32_0 = arith.constant 0 : i32
    %c0_i32_1 = arith.constant 0 : i32
    return %c0_i32, %c0_i32_0 : i32, i32
  }
  func.func @transform_2(%arg0: i32) -> (i32, i32) {
    %c0_i32 = arith.constant 0 : i32
    %c0_i32_0 = arith.constant 0 : i32
    %c0_i32_1 = arith.constant 0 : i32
    return %c0_i32, %c0_i32_0 : i32, i32
  }
  func.func @transform_3(%arg0: i32) -> (i32, i32) {
    %c0_i32 = arith.constant 0 : i32
    %c0_i32_0 = arith.constant 0 : i32
    %c0_i32_1 = arith.constant 0 : i32
    return %c0_i32, %c0_i32_0 : i32, i32
  }
  func.func @transform_4(%arg0: i32) -> (i32, i32) {
    %c0_i32 = arith.constant 0 : i32
    %c0_i32_0 = arith.constant 0 : i32
    %c0_i32_1 = arith.constant 0 : i32
    return %c0_i32, %c0_i32_0 : i32, i32
  }
  func.func @transform_5(%arg0: i32) -> (i32, i32) {
    %c0_i32 = arith.constant 0 : i32
    %c0_i32_0 = arith.constant 0 : i32
    return %arg0, %c0_i32 : i32, i32
  }
}

</mosaic_0001>

<llo_original>
// kernel: tpu_custom_call.1
$region0: #{tpu_custom_call.1}
  #allocation0 [shape = 'u32[]', space=smem, size = 0x4, offset = 0x4, fixed_abs, tag = 'smem constant byte address 0x4 - core index']
  #allocation1 [shape = 'u32[72,128]{1,0:T(1,128)}', space=vmem, size = 0x9000, scoped, tag = 'internal scratch']
  %s0 = inlined_call_operand.hbm [shape: bf16[256,128], index: 0, kind: input, shape index: {}]
  %s1 = inlined_call_operand.hbm [shape: bf16[128,256], index: 1, kind: input, shape index: {}]
  %s2 = inlined_call_operand.hbm [shape: f32[1,256], index: 2, kind: input, shape index: {}]
  %s3 = inlined_call_operand.hbm [shape: bf16[256,768], index: 3, kind: input, shape index: {}]
  %s4 = inlined_call_operand.hbm [shape: f32[1,768], index: 4, kind: input, shape index: {}]
  %s5 = inlined_call_operand.hbm [shape: f32[256,768], index: 5, kind: output, shape index: {}]
  %s6 = sld [smem:[#allocation0]]
  $region73: #{tpu_custom_call.1} parent=0
    _
  %s8 = ssub.s32 1, %s6
  %s9 = scalar_select 0, %s8, %s6
  $region1: #{tpu_custom_call.1} parent=0
    #allocation2 [shape = 'u8[65536]{0}', space=vmem, size = 0x10000, scoped, tag = 'input window, operand 0']
    #allocation3 [shape = 's32[2]{0}', space=sflag, size = 0x8, scoped, tag = 'scoped memory for tpu_custom_call.1']
    #allocation4 [shape = 's32[2]{0}', space=sflag, size = 0x8, scoped, tag = 'scoped memory for tpu_custom_call.1']
    #allocation5 [shape = 'u8[65536]{0}', space=vmem, size = 0x10000, scoped, tag = 'input window, operand 1, single buffered']
    #allocation6 [shape = 's32[1]{0}', space=sflag, size = 0x4, scoped, tag = 'scoped memory for tpu_custom_call.1']
    #allocation7 [shape = 'u8[1024]{0}', space=vmem, size = 0x400, scoped, tag = 'input window, operand 2, single buffered']
    #allocation8 [shape = 'u8[393216]{0}', space=vmem, size = 0x60000, scoped, tag = 'input window, operand 3, single buffered']
    #allocation9 [shape = 's32[1]{0}', space=sflag, size = 0x4, scoped, tag = 'scoped memory for tpu_custom_call.1']
    #allocation10 [shape = 'u8[3072]{0}', space=vmem, size = 0xc00, scoped, tag = 'input window, operand 4, single buffered']
    #allocation11 [shape = 'u8[786432]{0}', space=vmem, size = 0xc0000, scoped, tag = 'output window, operand 0']
    %10 = vsyncpa [#allocation3], 0
    %s11 = scalar_lea.sflag [#allocation3], 1
    %12 = vsyncpa %s11, 0
    %13 = vsyncpa [#allocation6], 0
    %14 = vsyncpa [#allocation9], 0
    %15 = vsyncpa [#allocation4], 0
    %s16 = scalar_lea.sflag [#allocation4], 1
    %17 = vsyncpa %s16, 0
    loop: start=0, step=1, limit=4
    $region2: #{tpu_custom_call.1} parent=1 // loop_pre_header
      _
    $region3: #{tpu_custom_call.1} parent=1 // loop_header
      %s19 = sphi 0, %s23
      %p20 = scmp.ge.s32.totalorder %s19, 4
      %s29 = sphi 0, %s31
      %s32 = sphi 0, %s29
      %s33 = sphi 0, %s32
      %s49 = sphi 0, %s33
      %s53 = sphi 0, %s53
      %s55 = sphi 0, %s53
      %s56 = sphi 0, %s55
      %s70 = sphi 0, %s56
      %s74 = sphi 0, %s74
      %s76 = sphi 0, %s74
      %s77 = sphi 0, %s76
      %s91 = sphi 0, %s77
      %s95 = sphi 0, %s95
      %s97 = sphi 0, %s95
      %s98 = sphi 0, %s97
      %s112 = sphi 0, %s98
      %s116 = sphi 0, %s116
      %s118 = sphi 0, %s116
      %s119 = sphi 0, %s118
      %s133 = sphi 0, %s119
      %s139 = sphi 0, %s141
      %s142 = sphi 0, %s139
      %s143 = sphi 0, %s142
      %s159 = sphi 0, %s143
    $region4: #{tpu_custom_call.1} parent=1 // loop_header_branch
      %22 = sbr.rel (%p20) target = $region8
    $region5: #{tpu_custom_call.1} parent=1 // loop_body
      %s24 = ssub.s32 %s19, 1
      %s25 = ssub.s32 %s19, 2
      %s26 = sadd.s32 %s19, 1
      %s27 = ssub.s32 %s19, %s26
      %p28 = scmp.eq.s32.totalorder %s27, 0
      %s30 = sadd.s32 %s29, 1
      %s31 = scalar_select %p28, %s29, %s30
      %p34 = pneg %p28
      %p35 = scmp.eq.s32.totalorder %s19, 1
      %p36 = por %p34, %p35
      %p37 = scmp.ne.s32.totalorder %s29, %s32
      %p38 = scmp.eq.s32.totalorder %s19, 0
      %p39 = por %p37, %p38
      %p40 = scmp.ne.s32.totalorder %s29, %s32
      %p41 = scmp.eq.s32.totalorder %s24, 1
      %p42 = por %p40, %p41
      %p43 = scmp.ne.s32.totalorder %s32, %s33
      %p44 = scmp.eq.s32.totalorder %s24, 0
      %p45 = por %p43, %p44
      %p46 = scmp.ne.s32.totalorder %s32, %s33
      %p47 = scmp.eq.s32.totalorder %s25, 1
      %p48 = por %p46, %p47
      %p50 = scmp.ne.s32.totalorder %s33, %s49
      %p51 = scmp.eq.s32.totalorder %s25, 0
      %p52 = por %p50, %p51
      %s54 = sadd.s32 %s53, 1
      %p57 = scmp.eq.s32.totalorder %s19, 1
      %p58 = scmp.ne.s32.totalorder %s53, %s55
      %p59 = scmp.eq.s32.totalorder %s19, 0
      %p60 = por %p58, %p59
      %p61 = scmp.ne.s32.totalorder %s53, %s55
      %p62 = scmp.eq.s32.totalorder %s24, 1
      %p63 = por %p61, %p62
      %p64 = scmp.ne.s32.totalorder %s55, %s56
      %p65 = scmp.eq.s32.totalorder %s24, 0
      %p66 = por %p64, %p65
      %p67 = scmp.ne.s32.totalorder %s55, %s56
      %p68 = scmp.eq.s32.totalorder %s25, 1
      %p69 = por %p67, %p68
      %p71 = scmp.ne.s32.totalorder %s56, %s70
      %p72 = scmp.eq.s32.totalorder %s25, 0
      %p73 = por %p71, %p72
      %s75 = sadd.s32 %s74, 1
      %p78 = scmp.eq.s32.totalorder %s19, 1
      %p79 = scmp.ne.s32.totalorder %s74, %s76
      %p80 = scmp.eq.s32.totalorder %s19, 0
      %p81 = por %p79, %p80
      %p82 = scmp.ne.s32.totalorder %s74, %s76
      %p83 = scmp.eq.s32.totalorder %s24, 1
      %p84 = por %p82, %p83
      %p85 = scmp.ne.s32.totalorder %s76, %s77
      %p86 = scmp.eq.s32.totalorder %s24, 0
      %p87 = por %p85, %p86
      %p88 = scmp.ne.s32.totalorder %s76, %s77
      %p89 = scmp.eq.s32.totalorder %s25, 1
      %p90 = por %p88, %p89
      %p92 = scmp.ne.s32.totalorder %s77, %s91
      %p93 = scmp.eq.s32.totalorder %s25, 0
      %p94 = por %p92, %p93
      %s96 = sadd.s32 %s95, 1
      %p99 = scmp.eq.s32.totalorder %s19, 1
      %p100 = scmp.ne.s32.totalorder %s95, %s97
      %p101 = scmp.eq.s32.totalorder %s19, 0
      %p102 = por %p100, %p101
      %p103 = scmp.ne.s32.totalorder %s95, %s97
      %p104 = scmp.eq.s32.totalorder %s24, 1
      %p105 = por %p103, %p104
      %p106 = scmp.ne.s32.totalorder %s97, %s98
      %p107 = scmp.eq.s32.totalorder %s24, 0
      %p108 = por %p106, %p107
      %p109 = scmp.ne.s32.totalorder %s97, %s98
      %p110 = scmp.eq.s32.totalorder %s25, 1
      %p111 = por %p109, %p110
      %p113 = scmp.ne.s32.totalorder %s98, %s112
      %p114 = scmp.eq.s32.totalorder %s25, 0
      %p115 = por %p113, %p114
      %s117 = sadd.s32 %s116, 1
      %p120 = scmp.eq.s32.totalorder %s19, 1
      %p121 = scmp.ne.s32.totalorder %s116, %s118
      %p122 = scmp.eq.s32.totalorder %s19, 0
      %p123 = por %p121, %p122
      %p124 = scmp.ne.s32.totalorder %s116, %s118
      %p125 = scmp.eq.s32.totalorder %s24, 1
      %p126 = por %p124, %p125
      %p127 = scmp.ne.s32.totalorder %s118, %s119
      %p128 = scmp.eq.s32.totalorder %s24, 0
      %p129 = por %p127, %p128
      %p130 = scmp.ne.s32.totalorder %s118, %s119
      %p131 = scmp.eq.s32.totalorder %s25, 1
      %p132 = por %p130, %p131
      %p134 = scmp.ne.s32.totalorder %s119, %s133
      %p135 = scmp.eq.s32.totalorder %s25, 0
      %p136 = por %p134, %p135
      %s137 = ssub.s32 %s19, %s26
      %p138 = scmp.eq.s32.totalorder %s137, 0
      %s140 = sadd.s32 %s139, 1
      %s141 = scalar_select %p138, %s139, %s140
      %p144 = pneg %p138
      %p145 = scmp.eq.s32.totalorder %s19, 1
      %p146 = por %p144, %p145
      %p147 = scmp.ne.s32.totalorder %s139, %s142
      %p148 = scmp.eq.s32.totalorder %s19, 0
      %p149 = por %p147, %p148
      %p150 = scmp.ne.s32.totalorder %s139, %s142
      %p151 = scmp.eq.s32.totalorder %s24, 1
      %p152 = por %p150, %p151
      %p153 = scmp.ne.s32.totalorder %s142, %s143
      %p154 = scmp.eq.s32.totalorder %s24, 0
      %p155 = por %p153, %p154
      %p156 = scmp.ne.s32.totalorder %s142, %s143
      %p157 = scmp.eq.s32.totalorder %s25, 1
      %p158 = por %p156, %p157
      %p160 = scmp.ne.s32.totalorder %s143, %s159
      %p161 = scmp.eq.s32.totalorder %s25, 0
      %p162 = por %p160, %p161
      %p163 = scmp.le.s32.totalorder 1, %s19
      %p164 = scmp.lt.s32.totalorder %s19, 3
      %p165 = pnand %p163, %p164
      %p166 = pneg %p165
      // Predicated region
      $region9: #{tpu_custom_call.1} parent=5 // pred_check
        _
      $region10: #{tpu_custom_call.1} parent=5 // pred_check_branch
        %168 = sbr.rel (%p165) target = $region12
      $region11: #{tpu_custom_call.1} parent=5 // pred_region
        %s169 = ssub.s32 %s19, 1
        // Predicated region
        $region13: #{tpu_custom_call.1} parent=11 // pred_check
          %p170 = pneg %p66
        $region14: #{tpu_custom_call.1} parent=11 // pred_check_branch
          %172 = sbr.rel (%p170) target = $region16
        $region15: #{tpu_custom_call.1} parent=11 // pred_region
          %174 = vsyncadd [#allocation6], 0
          %s175 = sshll.u32 %s1, 4
          %s176 = int_to_ptr.hbm [resolvable:$true] %s175
          %s177 = sshll.u32 [#allocation5], 4
          %s178 = int_to_ptr.vmem [resolvable:$true] %s177
          %183 = dma.hbm_to_vmem [thread:$0]  %s176, 2048, %s178, [#allocation6], 128, 128, 8
        $region16: #{tpu_custom_call.1} parent=11 // pred_fallthru
          _
        // Predicated region
        $region17: #{tpu_custom_call.1} parent=11 // pred_check
          %p184 = pneg %p87
        $region18: #{tpu_custom_call.1} parent=11 // pred_check_branch
          %186 = sbr.rel (%p184) target = $region20
        $region19: #{tpu_custom_call.1} parent=11 // pred_region
          %188 = vsyncadd [#allocation6], 0
          %s190 = sshll.u32 %s2, 4
          %s191 = int_to_ptr.hbm [resolvable:$true] %s190
          %s192 = sshll.u32 [#allocation7], 4
          %s193 = int_to_ptr.vmem [resolvable:$true] %s192
          %195 = dma.hbm_to_vmem [thread:$0]  %s191, 32, %s193, [#allocation6]
        $region20: #{tpu_custom_call.1} parent=11 // pred_fallthru
          _
        // Predicated region
        $region21: #{tpu_custom_call.1} parent=11 // pred_check
          %p196 = pneg %p108
        $region22: #{tpu_custom_call.1} parent=11 // pred_check_branch
          %198 = sbr.rel (%p196) target = $region24
        $region23: #{tpu_custom_call.1} parent=11 // pred_region
          %200 = vsyncadd [#allocation9], 0
          %s201 = sshll.u32 %s3, 4
          %s202 = int_to_ptr.hbm [resolvable:$true] %s201
          %s203 = sshll.u32 [#allocation8], 4
          %s204 = int_to_ptr.vmem [resolvable:$true] %s203
          %209 = dma.hbm_to_vmem [thread:$0]  %s202, 12288, %s204, [#allocation9], 384, 384, 24
        $region24: #{tpu_custom_call.1} parent=11 // pred_fallthru
          _
        // Predicated region
        $region25: #{tpu_custom_call.1} parent=11 // pred_check
          %p210 = pneg %p129
        $region26: #{tpu_custom_call.1} parent=11 // pred_check_branch
          %212 = sbr.rel (%p210) target = $region28
        $region27: #{tpu_custom_call.1} parent=11 // pred_region
          %214 = vsyncadd [#allocation9], 0
          %s216 = sshll.u32 %s4, 4
          %s217 = int_to_ptr.hbm [resolvable:$true] %s216
          %s218 = sshll.u32 [#allocation10], 4
          %s219 = int_to_ptr.vmem [resolvable:$true] %s218
          %221 = dma.hbm_to_vmem [thread:$0]  %s217, 96, %s219, [#allocation9]
        $region28: #{tpu_custom_call.1} parent=11 // pred_fallthru
          _
      $region12: #{tpu_custom_call.1} parent=5 // pred_fallthru
        _
      %p222 = scmp.lt.s32.totalorder %s19, 2
      // Predicated region
      $region29: #{tpu_custom_call.1} parent=5 // pred_check
        %p223 = pneg %p222
      $region30: #{tpu_custom_call.1} parent=5 // pred_check_branch
        %225 = sbr.rel (%p223) target = $region32
      $region31: #{tpu_custom_call.1} parent=5 // pred_region
        // Predicated region
        $region33: #{tpu_custom_call.1} parent=31 // pred_check
          %p226 = pneg %p39
        $region34: #{tpu_custom_call.1} parent=31 // pred_check_branch
          %228 = sbr.rel (%p226) target = $region36
        $region35: #{tpu_custom_call.1} parent=31 // pred_region
          %s229 = sand.u32 %s29, 1
          %s230 = scalar_lea.sflag [#allocation3], %s229
          %s231 = sand.u32 %s29, 1
          %s232 = smul.addr %s231, 64
          %s233 = scalar_lea.vmem [#allocation2], %s232
          %s234 = smul.u32 16, %s19
          %236 = vsyncadd %s230, 0
          %s237 = smul.addr %s234, 4
          %s238 = scalar_lea.hbm %s0, %s237
          %s239 = sshll.u32 %s238, 4
          %s240 = int_to_ptr.hbm [resolvable:$true] %s239
          %s241 = sshll.u32 %s233, 4
          %s242 = int_to_ptr.vmem [resolvable:$true] %s241
          %247 = dma.hbm_to_vmem [thread:$0]  %s240, 1024, %s242, %s230, 64, 64, 4
        $region36: #{tpu_custom_call.1} parent=31 // pred_fallthru
          _
      $region32: #{tpu_custom_call.1} parent=5 // pred_fallthru
        _
      %p248 = scmp.le.s32.totalorder 1, %s19
      %p249 = scmp.lt.s32.totalorder %s19, 3
      %p250 = pnand %p248, %p249
      %p251 = pneg %p250
      // Predicated region
      $region37: #{tpu_custom_call.1} parent=5 // pred_check
        _
      $region38: #{tpu_custom_call.1} parent=5 // pred_check_branch
        %253 = sbr.rel (%p250) target = $region40
      $region39: #{tpu_custom_call.1} parent=5 // pred_region
        %s254 = ssub.s32 %s19, 1
        %s255 = sand.u32 %s32, 1
        %s256 = scalar_lea.sflag [#allocation3], %s255
        %s257 = sand.u32 %s32, 1
        %s258 = smul.addr %s257, 64
        %s259 = scalar_lea.vmem [#allocation2], %s258
        // Predicated region
        $region41: #{tpu_custom_call.1} parent=39 // pred_check
          %p260 = pneg %p45
        $region42: #{tpu_custom_call.1} parent=39 // pred_check_branch
          %262 = sbr.rel (%p260) target = $region44
        $region43: #{tpu_custom_call.1} parent=39 // pred_region
          %264 = dma.done %s256, 1024
        $region44: #{tpu_custom_call.1} parent=39 // pred_fallthru
          _
        // Predicated region
        $region45: #{tpu_custom_call.1} parent=39 // pred_check
          %p265 = pneg %p66
        $region46: #{tpu_custom_call.1} parent=39 // pred_check_branch
          %267 = sbr.rel (%p265) target = $region48
        $region47: #{tpu_custom_call.1} parent=39 // pred_region
          %269 = dma.done [#allocation6], 2048
        $region48: #{tpu_custom_call.1} parent=39 // pred_fallthru
          _
        // Predicated region
        $region49: #{tpu_custom_call.1} parent=39 // pred_check
          %p270 = pneg %p87
        $region50: #{tpu_custom_call.1} parent=39 // pred_check_branch
          %272 = sbr.rel (%p270) target = $region52
        $region51: #{tpu_custom_call.1} parent=39 // pred_region
          %274 = dma.done [#allocation6], 32
        $region52: #{tpu_custom_call.1} parent=39 // pred_fallthru
          _
        // Predicated region
        $region53: #{tpu_custom_call.1} parent=39 // pred_check
          %p275 = pneg %p108
        $region54: #{tpu_custom_call.1} parent=39 // pred_check_branch
          %277 = sbr.rel (%p275) target = $region56
        $region55: #{tpu_custom_call.1} parent=39 // pred_region
          %279 = dma.done [#allocation9], 12288
        $region56: #{tpu_custom_call.1} parent=39 // pred_fallthru
          _
        // Predicated region
        $region57: #{tpu_custom_call.1} parent=39 // pred_check
          %p280 = pneg %p129
        $region58: #{tpu_custom_call.1} parent=39 // pred_check_branch
          %282 = sbr.rel (%p280) target = $region60
        $region59: #{tpu_custom_call.1} parent=39 // pred_region
          %284 = dma.done [#allocation9], 96
        $region60: #{tpu_custom_call.1} parent=39 // pred_fallthru
          _
        %s285 = sand.u32 %s32, 1
        %s286 = scalar_lea.sflag [#allocation3], %s285
        %s287 = sand.u32 %s32, 1
        %s288 = smul.addr %s287, 64
        %s289 = scalar_lea.vmem [#allocation2], %s288
        %p290 = pneg %p45
        %p291 = pneg %p42
        %p292 = pneg %p66
        %p293 = pneg %p63
        %p294 = pneg %p87
        %p295 = pneg %p84
        %p296 = pneg %p108
        %p297 = pneg %p105
        %p298 = pneg %p129
        %p299 = pneg %p126
        %p300 = pneg %p155
        %p301 = pneg %p152
        %s302 = sand.u32 %s142, 1
        %s303 = scalar_lea.sflag [#allocation4], %s302
        %s304 = sand.u32 %s142, 1
        %s305 = smul.addr %s304, 768
        %s306 = scalar_lea.vmem [#allocation11], %s305
        %s307 = smul.u32 16, %s24
        %s308 = smul.u32 16, %s24
        %v309 = vld [vmem:[%s259] sm:$0xf]
        %v310 = vld [vmem:[%s259 + $0x4] sm:$0xf]
        %v311 = vld [vmem:[%s259 + $0x8] sm:$0xf]
        %v312 = vld [vmem:[%s259 + $0xc] sm:$0xf]
        %v313 = vld [vmem:[%s259 + $0x10] sm:$0xf]
        %v314 = vld [vmem:[%s259 + $0x14] sm:$0xf]
        %v315 = vld [vmem:[%s259 + $0x18] sm:$0xf]
        %v316 = vld [vmem:[%s259 + $0x1c] sm:$0xf]
        %v317 = vld [vmem:[%s259 + $0x20] sm:$0xf]
        %v318 = vld [vmem:[%s259 + $0x24] sm:$0xf]
        %v319 = vld [vmem:[%s259 + $0x28] sm:$0xf]
        %v320 = vld [vmem:[%s259 + $0x2c] sm:$0xf]
        %v321 = vld [vmem:[%s259 + $0x30] sm:$0xf]
        %v322 = vld [vmem:[%s259 + $0x34] sm:$0xf]
        %v323 = vld [vmem:[%s259 + $0x38] sm:$0xf]
        %v324 = vld [vmem:[%s259 + $0x3c] sm:$0xf]
        %v325 = vld [vmem:[#allocation5] sm:$0xff]
        %v326 = vld [vmem:[#allocation5 + $0x8] sm:$0xff]
        %v327 = vld [vmem:[#allocation5 + $0x10] sm:$0xff]
        %v328 = vld [vmem:[#allocation5 + $0x18] sm:$0xff]
        %v329 = vld [vmem:[#allocation5 + $0x20] sm:$0xff]
        %v330 = vld [vmem:[#allocation5 + $0x28] sm:$0xff]
        %v331 = vld [vmem:[#allocation5 + $0x30] sm:$0xff]
        %v332 = vld [vmem:[#allocation5 + $0x38] sm:$0xff]
        %v333 = vld [vmem:[#allocation5 + $0x40] sm:$0xff]
        %v334 = vld [vmem:[#allocation5 + $0x48] sm:$0xff]
        %v335 = vld [vmem:[#allocation5 + $0x50] sm:$0xff]
        %v336 = vld [vmem:[#allocation5 + $0x58] sm:$0xff]
        %v337 = vld [vmem:[#allocation5 + $0x60] sm:$0xff]
        %v338 = vld [vmem:[#allocation5 + $0x68] sm:$0xff]
        %v339 = vld [vmem:[#allocation5 + $0x70] sm:$0xff]
        %v340 = vld [vmem:[#allocation5 + $0x78] sm:$0xff]
        %v341 = vld [vmem:[#allocation7] sm:$0x3]
        %v343 = vperm.slane %v341, 0
        %v344 = vperm.slane %v341, 1
        %v363 = vunpack.c.l.b16 %v309
        %v364 = vunpack.c.l.b16 %v310
        %v365 = vunpack.c.l.b16 %v311
        %v366 = vunpack.c.l.b16 %v312
        %v367 = vunpack.c.l.b16 %v313
        %v368 = vunpack.c.l.b16 %v314
        %v369 = vunpack.c.l.b16 %v315
        %v370 = vunpack.c.l.b16 %v316
        %v371 = vunpack.c.l.b16 %v317
        %v372 = vunpack.c.l.b16 %v318
        %v373 = vunpack.c.l.b16 %v319
        %v374 = vunpack.c.l.b16 %v320
        %v375 = vunpack.c.l.b16 %v321
        %v376 = vunpack.c.l.b16 %v322
        %v377 = vunpack.c.l.b16 %v323
        %v378 = vunpack.c.l.b16 %v324
        %v379 = vpack.c.b16 %v364, %v363
        %v380 = vpack.c.b16 %v366, %v365
        %v381 = vpack.c.b16 %v368, %v367
        %v382 = vpack.c.b16 %v370, %v369
        %v383 = vpack.c.b16 %v372, %v371
        %v384 = vpack.c.b16 %v374, %v373
        %v385 = vpack.c.b16 %v376, %v375
        %v386 = vpack.c.b16 %v378, %v377
        %v411 = vunpack.c.l.b16 %v325
        %v412 = vunpack.c.h.b16 %v325
        %v413 = vunpack.c.l.b16 %v326
        %v414 = vunpack.c.h.b16 %v326
        %v415 = vunpack.c.l.b16 %v327
        %v416 = vunpack.c.h.b16 %v327
        %v417 = vunpack.c.l.b16 %v328
        %v418 = vunpack.c.h.b16 %v328
        %v419 = vunpack.c.l.b16 %v329
        %v420 = vunpack.c.h.b16 %v329
        %v421 = vunpack.c.l.b16 %v330
        %v422 = vunpack.c.h.b16 %v330
        %v423 = vunpack.c.l.b16 %v331
        %v424 = vunpack.c.h.b16 %v331
        %v425 = vunpack.c.l.b16 %v332
        %v426 = vunpack.c.h.b16 %v332
        %v427 = vunpack.c.l.b16 %v333
        %v428 = vunpack.c.h.b16 %v333
        %v429 = vunpack.c.l.b16 %v334
        %v430 = vunpack.c.h.b16 %v334
        %v431 = vunpack.c.l.b16 %v335
        %v432 = vunpack.c.h.b16 %v335
        %v433 = vunpack.c.l.b16 %v336
        %v434 = vunpack.c.h.b16 %v336
        %v435 = vunpack.c.l.b16 %v337
        %v436 = vunpack.c.h.b16 %v337
        %v437 = vunpack.c.l.b16 %v338
        %v438 = vunpack.c.h.b16 %v338
        %v439 = vunpack.c.l.b16 %v339
        %v440 = vunpack.c.h.b16 %v339
        %v441 = vunpack.c.l.b16 %v340
        %v442 = vunpack.c.h.b16 %v340
        %v443 = vpack.c.b16 %v413, %v411
        %v444 = vpack.c.b16 %v414, %v412
        %v445 = vpack.c.b16 %v417, %v415
        %v446 = vpack.c.b16 %v418, %v416
        %v447 = vpack.c.b16 %v421, %v419
        %v448 = vpack.c.b16 %v422, %v420
        %v449 = vpack.c.b16 %v425, %v423
        %v450 = vpack.c.b16 %v426, %v424
        %v451 = vpack.c.b16 %v429, %v427
        %v452 = vpack.c.b16 %v430, %v428
        %v453 = vpack.c.b16 %v433, %v431
        %v454 = vpack.c.b16 %v434, %v432
        %v455 = vpack.c.b16 %v437, %v435
        %v456 = vpack.c.b16 %v438, %v436
        %v457 = vpack.c.b16 %v441, %v439
        %v458 = vpack.c.b16 %v442, %v440
        %475 = vmatpush.bf16.msra.mxu0 %v457
        %476 = vmatpush.bf16.msra.mxu0 %v455
        %477 = vmatpush.bf16.msra.mxu0 %v453
        %478 = vmatpush.bf16.msra.mxu0 %v451
        %479 = vmatpush.bf16.msra.mxu0 %v449
        %480 = vmatpush.bf16.msra.mxu0 %v447
        %481 = vmatpush.bf16.msra.mxu0 %v445
        %482 = vmatpush.bf16.msra.mxu0 %v443
        %483 = vmatmul.bf16.gmra.mxu0 %v379
        %v484 = vpop.f32.mrf.mxu0
        %v485 = vadd.f32 %v343, %v484
        %v486 = vpop.f32.mrf.mxu0
        %v487 = vadd.f32 %v343, %v486
        %488 = vmatmul.bf16.gmra.mxu0 %v380
        %v489 = vpop.f32.mrf.mxu0
        %v490 = vadd.f32 %v343, %v489
        %v491 = vpop.f32.mrf.mxu0
        %v492 = vadd.f32 %v343, %v491
        %493 = vmatmul.bf16.gmra.mxu0 %v381
        %v494 = vpop.f32.mrf.mxu0
        %v495 = vadd.f32 %v343, %v494
        %v496 = vpop.f32.mrf.mxu0
        %v497 = vadd.f32 %v343, %v496
        %498 = vmatmul.bf16.gmra.mxu0 %v382
        %v499 = vpop.f32.mrf.mxu0
        %v500 = vadd.f32 %v343, %v499
        %v501 = vpop.f32.mrf.mxu0
        %v502 = vadd.f32 %v343, %v501
        %503 = vmatmul.bf16.gmra.mxu0 %v383
        %v504 = vpop.f32.mrf.mxu0
        %v505 = vadd.f32 %v343, %v504
        %v506 = vpop.f32.mrf.mxu0
        %v507 = vadd.f32 %v343, %v506
        %508 = vmatmul.bf16.gmra.mxu0 %v384
        %v509 = vpop.f32.mrf.mxu0
        %v510 = vadd.f32 %v343, %v509
        %v511 = vpop.f32.mrf.mxu0
        %v512 = vadd.f32 %v343, %v511
        %513 = vmatmul.bf16.gmra.mxu0 %v385
        %v514 = vpop.f32.mrf.mxu0
        %v515 = vadd.f32 %v343, %v514
        %v516 = vpop.f32.mrf.mxu0
        %v517 = vadd.f32 %v343, %v516
        %518 = vmatmul.bf16.gmra.mxu0 %v386
        %v519 = vpop.f32.mrf.mxu0
        %v520 = vadd.f32 %v343, %v519
        %v521 = vpop.f32.mrf.mxu0
        %v522 = vadd.f32 %v343, %v521
        %523 = vdwg.mxu0
        %524 = vmatpush.bf16.msra.mxu0 %v458
        %525 = vmatpush.bf16.msra.mxu0 %v456
        %526 = vmatpush.bf16.msra.mxu0 %v454
        %527 = vmatpush.bf16.msra.mxu0 %v452
        %528 = vmatpush.bf16.msra.mxu0 %v450
        %529 = vmatpush.bf16.msra.mxu0 %v448
        %530 = vmatpush.bf16.msra.mxu0 %v446
        %531 = vmatpush.bf16.msra.mxu0 %v444
        %532 = vmatmul.bf16.gmra.mxu0 %v379
        %v533 = vpop.f32.mrf.mxu0
        %v534 = vadd.f32 %v344, %v533
        %v535 = vpop.f32.mrf.mxu0
        %v536 = vadd.f32 %v344, %v535
        %537 = vmatmul.bf16.gmra.mxu0 %v380
        %v538 = vpop.f32.mrf.mxu0
        %v539 = vadd.f32 %v344, %v538
        %v540 = vpop.f32.mrf.mxu0
        %v541 = vadd.f32 %v344, %v540
        %542 = vmatmul.bf16.gmra.mxu0 %v381
        %v543 = vpop.f32.mrf.mxu0
        %v544 = vadd.f32 %v344, %v543
        %v545 = vpop.f32.mrf.mxu0
        %v546 = vadd.f32 %v344, %v545
        %547 = vmatmul.bf16.gmra.mxu0 %v382
        %v548 = vpop.f32.mrf.mxu0
        %v549 = vadd.f32 %v344, %v548
        %v550 = vpop.f32.mrf.mxu0
        %v551 = vadd.f32 %v344, %v550
        %552 = vmatmul.bf16.gmra.mxu0 %v383
        %v553 = vpop.f32.mrf.mxu0
        %v554 = vadd.f32 %v344, %v553
        %v555 = vpop.f32.mrf.mxu0
        %v556 = vadd.f32 %v344, %v555
        %557 = vmatmul.bf16.gmra.mxu0 %v384
        %v558 = vpop.f32.mrf.mxu0
        %v559 = vadd.f32 %v344, %v558
        %v560 = vpop.f32.mrf.mxu0
        %v561 = vadd.f32 %v344, %v560
        %562 = vmatmul.bf16.gmra.mxu0 %v385
        %v563 = vpop.f32.mrf.mxu0
        %v564 = vadd.f32 %v344, %v563
        %v565 = vpop.f32.mrf.mxu0
        %v566 = vadd.f32 %v344, %v565
        %567 = vmatmul.bf16.gmra.mxu0 %v386
        %v568 = vpop.f32.mrf.mxu0
        %v569 = vadd.f32 %v344, %v568
        %v570 = vpop.f32.mrf.mxu0
        %v571 = vadd.f32 %v344, %v570
        %572 = vdwg.mxu0
        %v573 = vmax.f32 %v485, 0.0
        %v574 = vmax.f32 %v534, 0.0
        %v575 = vmax.f32 %v487, 0.0
        %v576 = vmax.f32 %v536, 0.0
        %v577 = vmax.f32 %v490, 0.0
        %v578 = vmax.f32 %v539, 0.0
        %v579 = vmax.f32 %v492, 0.0
        %v580 = vmax.f32 %v541, 0.0
        %v581 = vmax.f32 %v495, 0.0
        %v582 = vmax.f32 %v544, 0.0
        %v583 = vmax.f32 %v497, 0.0
        %v584 = vmax.f32 %v546, 0.0
        %v585 = vmax.f32 %v500, 0.0
        %v586 = vmax.f32 %v549, 0.0
        %v587 = vmax.f32 %v502, 0.0
        %v588 = vmax.f32 %v551, 0.0
        %v589 = vmax.f32 %v505, 0.0
        %v590 = vmax.f32 %v554, 0.0
        %v591 = vmax.f32 %v507, 0.0
        %v592 = vmax.f32 %v556, 0.0
        %v593 = vmax.f32 %v510, 0.0
        %v594 = vmax.f32 %v559, 0.0
        %v595 = vmax.f32 %v512, 0.0
        %v596 = vmax.f32 %v561, 0.0
        %v597 = vmax.f32 %v515, 0.0
        %v598 = vmax.f32 %v564, 0.0
        %v599 = vmax.f32 %v517, 0.0
        %v600 = vmax.f32 %v566, 0.0
        %v601 = vmax.f32 %v520, 0.0
        %v602 = vmax.f32 %v569, 0.0
        %v603 = vmax.f32 %v522, 0.0
        %v604 = vmax.f32 %v571, 0.0
        %v605 = vpack.c.bf16 %v575, %v573
        %v606 = vpack.c.bf16 %v576, %v574
        %v607 = vpack.c.bf16 %v579, %v577
        %v608 = vpack.c.bf16 %v580, %v578
        %v609 = vpack.c.bf16 %v583, %v581
        %v610 = vpack.c.bf16 %v584, %v582
        %v611 = vpack.c.bf16 %v587, %v585
        %v612 = vpack.c.bf16 %v588, %v586
        %v613 = vpack.c.bf16 %v591, %v589
        %v614 = vpack.c.bf16 %v592, %v590
        %v615 = vpack.c.bf16 %v595, %v593
        %v616 = vpack.c.bf16 %v596, %v594
        %v617 = vpack.c.bf16 %v599, %v597
        %v618 = vpack.c.bf16 %v600, %v598
        %v619 = vpack.c.bf16 %v603, %v601
        %v620 = vpack.c.bf16 %v604, %v602
        %v621 = vld [vmem:[#allocation8] sm:$0xff]
        %v622 = vld [vmem:[#allocation8 + $0x8] sm:$0xff]
        %v623 = vld [vmem:[#allocation8 + $0x10] sm:$0xff]
        %v624 = vld [vmem:[#allocation8 + $0x18] sm:$0xff]
        %v625 = vld [vmem:[#allocation8 + $0x20] sm:$0xff]
        %v626 = vld [vmem:[#allocation8 + $0x28] sm:$0xff]
        %v627 = vld [vmem:[#allocation8 + $0x30] sm:$0xff]
        %v628 = vld [vmem:[#allocation8 + $0x38] sm:$0xff]
        %v629 = vld [vmem:[#allocation8 + $0x40] sm:$0xff]
        %v630 = vld [vmem:[#allocation8 + $0x48] sm:$0xff]
        %v631 = vld [vmem:[#allocation8 + $0x50] sm:$0xff]
        %v632 = vld [vmem:[#allocation8 + $0x58] sm:$0xff]
        %v633 = vld [vmem:[#allocation8 + $0x60] sm:$0xff]
        %v634 = vld [vmem:[#allocation8 + $0x68] sm:$0xff]
        %v635 = vld [vmem:[#allocation8 + $0x70] sm:$0xff]
        %v636 = vld [vmem:[#allocation8 + $0x78] sm:$0xff]
        %v637 = vld [vmem:[#allocation8 + $0x80] sm:$0xff]
        %v638 = vld [vmem:[#allocation8 + $0x88] sm:$0xff]
        %v639 = vld [vmem:[#allocation8 + $0x90] sm:$0xff]
        %v640 = vld [vmem:[#allocation8 + $0x98] sm:$0xff]
        %v641 = vld [vmem:[#allocation8 + $0xa0] sm:$0xff]
        %v642 = vld [vmem:[#allocation8 + $0xa8] sm:$0xff]
        %v643 = vld [vmem:[#allocation8 + $0xb0] sm:$0xff]
        %v644 = vld [vmem:[#allocation8 + $0xb8] sm:$0xff]
        %v645 = vld [vmem:[#allocation8 + $0xc0] sm:$0xff]
        %v646 = vld [vmem:[#allocation8 + $0xc8] sm:$0xff]
        %v647 = vld [vmem:[#allocation8 + $0xd0] sm:$0xff]
        %v648 = vld [vmem:[#allocation8 + $0xd8] sm:$0xff]
        %v649 = vld [vmem:[#allocation8 + $0xe0] sm:$0xff]
        %v650 = vld [vmem:[#allocation8 + $0xe8] sm:$0xff]
        %v651 = vld [vmem:[#allocation8 + $0xf0] sm:$0xff]
        %v652 = vld [vmem:[#allocation8 + $0xf8] sm:$0xff]
        %v653 = vld [vmem:[#allocation8 + $0x100] sm:$0xff]
        %v654 = vld [vmem:[#allocation8 + $0x108] sm:$0xff]
        %v655 = vld [vmem:[#allocation8 + $0x110] sm:$0xff]
        %v656 = vld [vmem:[#allocation8 + $0x118] sm:$0xff]
        %v657 = vld [vmem:[#allocation8 + $0x120] sm:$0xff]
        %v658 = vld [vmem:[#allocation8 + $0x128] sm:$0xff]
        %v659 = vld [vmem:[#allocation8 + $0x130] sm:$0xff]
        %v660 = vld [vmem:[#allocation8 + $0x138] sm:$0xff]
        %v661 = vld [vmem:[#allocation8 + $0x140] sm:$0xff]
        %v662 = vld [vmem:[#allocation8 + $0x148] sm:$0xff]
        %v663 = vld [vmem:[#allocation8 + $0x150] sm:$0xff]
        %v664 = vld [vmem:[#allocation8 + $0x158] sm:$0xff]
        %v665 = vld [vmem:[#allocation8 + $0x160] sm:$0xff]
        %v666 = vld [vmem:[#allocation8 + $0x168] sm:$0xff]
        %v667 = vld [vmem:[#allocation8 + $0x170] sm:$0xff]
        %v668 = vld [vmem:[#allocation8 + $0x178] sm:$0xff]
        %v669 = vld [vmem:[#allocation8 + $0x180] sm:$0xff]
        %v670 = vld [vmem:[#allocation8 + $0x188] sm:$0xff]
        %v671 = vld [vmem:[#allocation8 + $0x190] sm:$0xff]
        %v672 = vld [vmem:[#allocation8 + $0x198] sm:$0xff]
        %v673 = vld [vmem:[#allocation8 + $0x1a0] sm:$0xff]
        %v674 = vld [vmem:[#allocation8 + $0x1a8] sm:$0xff]
        %v675 = vld [vmem:[#allocation8 + $0x1b0] sm:$0xff]
        %v676 = vld [vmem:[#allocation8 + $0x1b8] sm:$0xff]
        %v677 = vld [vmem:[#allocation8 + $0x1c0] sm:$0xff]
        %v678 = vld [vmem:[#allocation8 + $0x1c8] sm:$0xff]
        %v679 = vld [vmem:[#allocation8 + $0x1d0] sm:$0xff]
        %v680 = vld [vmem:[#allocation8 + $0x1d8] sm:$0xff]
        %v681 = vld [vmem:[#allocation8 + $0x1e0] sm:$0xff]
        %v682 = vld [vmem:[#allocation8 + $0x1e8] sm:$0xff]
        %v683 = vld [vmem:[#allocation8 + $0x1f0] sm:$0xff]
        %v684 = vld [vmem:[#allocation8 + $0x1f8] sm:$0xff]
        %v685 = vld [vmem:[#allocation8 + $0x200] sm:$0xff]
        %v686 = vld [vmem:[#allocation8 + $0x208] sm:$0xff]
        %v687 = vld [vmem:[#allocation8 + $0x210] sm:$0xff]
        %v688 = vld [vmem:[#allocation8 + $0x218] sm:$0xff]
        %v689 = vld [vmem:[#allocation8 + $0x220] sm:$0xff]
        %v690 = vld [vmem:[#allocation8 + $0x228] sm:$0xff]
        %v691 = vld [vmem:[#allocation8 + $0x230] sm:$0xff]
        %v692 = vld [vmem:[#allocation8 + $0x238] sm:$0xff]
        %v693 = vld [vmem:[#allocation8 + $0x240] sm:$0xff]
        %v694 = vld [vmem:[#allocation8 + $0x248] sm:$0xff]
        %v695 = vld [vmem:[#allocation8 + $0x250] sm:$0xff]
        %v696 = vld [vmem:[#allocation8 + $0x258] sm:$0xff]
        %v697 = vld [vmem:[#allocation8 + $0x260] sm:$0xff]
        %v698 = vld [vmem:[#allocation8 + $0x268] sm:$0xff]
        %v699 = vld [vmem:[#allocation8 + $0x270] sm:$0xff]
        %v700 = vld [vmem:[#allocation8 + $0x278] sm:$0xff]
        %v701 = vld [vmem:[#allocation8 + $0x280] sm:$0xff]
        %v702 = vld [vmem:[#allocation8 + $0x288] sm:$0xff]
        %v703 = vld [vmem:[#allocation8 + $0x290] sm:$0xff]
        %v704 = vld [vmem:[#allocation8 + $0x298] sm:$0xff]
        %v705 = vld [vmem:[#allocation8 + $0x2a0] sm:$0xff]
        %v706 = vld [vmem:[#allocation8 + $0x2a8] sm:$0xff]
        %v707 = vld [vmem:[#allocation8 + $0x2b0] sm:$0xff]
        %v708 = vld [vmem:[#allocation8 + $0x2b8] sm:$0xff]
        %v709 = vld [vmem:[#allocation8 + $0x2c0] sm:$0xff]
        %v710 = vld [vmem:[#allocation8 + $0x2c8] sm:$0xff]
        %v711 = vld [vmem:[#allocation8 + $0x2d0] sm:$0xff]
        %v712 = vld [vmem:[#allocation8 + $0x2d8] sm:$0xff]
        %v713 = vld [vmem:[#allocation8 + $0x2e0] sm:$0xff]
        %v714 = vld [vmem:[#allocation8 + $0x2e8] sm:$0xff]
        %v715 = vld [vmem:[#allocation8 + $0x2f0] sm:$0xff]
        %v716 = vld [vmem:[#allocation8 + $0x2f8] sm:$0xff]
        %v717 = vld [vmem:[#allocation10] sm:$0x3f]
        %v719 = vperm.slane %v717, 0
        %v720 = vperm.slane %v717, 1
        %v721 = vperm.slane %v717, 2
        %v722 = vperm.slane %v717, 3
        %v723 = vperm.slane %v717, 4
        %v724 = vperm.slane %v717, 5
        %v827 = vunpack.c.l.b16 %v621
        %v828 = vunpack.c.h.b16 %v621
        %v829 = vunpack.c.l.b16 %v622
        %v830 = vunpack.c.h.b16 %v622
        %v831 = vunpack.c.l.b16 %v623
        %v832 = vunpack.c.h.b16 %v623
        %v833 = vunpack.c.l.b16 %v624
        %v834 = vunpack.c.h.b16 %v624
        %v835 = vunpack.c.l.b16 %v625
        %v836 = vunpack.c.h.b16 %v625
        %v837 = vunpack.c.l.b16 %v626
        %v838 = vunpack.c.h.b16 %v626
        %v839 = vunpack.c.l.b16 %v627
        %v840 = vunpack.c.h.b16 %v627
        %v841 = vunpack.c.l.b16 %v628
        %v842 = vunpack.c.h.b16 %v628
        %v843 = vunpack.c.l.b16 %v629
        %v844 = vunpack.c.h.b16 %v629
        %v845 = vunpack.c.l.b16 %v630
        %v846 = vunpack.c.h.b16 %v630
        %v847 = vunpack.c.l.b16 %v631
        %v848 = vunpack.c.h.b16 %v631
        %v849 = vunpack.c.l.b16 %v632
        %v850 = vunpack.c.h.b16 %v632
        %v851 = vunpack.c.l.b16 %v633
        %v852 = vunpack.c.h.b16 %v633
        %v853 = vunpack.c.l.b16 %v634
        %v854 = vunpack.c.h.b16 %v634
        %v855 = vunpack.c.l.b16 %v635
        %v856 = vunpack.c.h.b16 %v635
        %v857 = vunpack.c.l.b16 %v636
        %v858 = vunpack.c.h.b16 %v636
        %v859 = vunpack.c.l.b16 %v637
        %v860 = vunpack.c.h.b16 %v637
        %v861 = vunpack.c.l.b16 %v638
        %v862 = vunpack.c.h.b16 %v638
        %v863 = vunpack.c.l.b16 %v639
        %v864 = vunpack.c.h.b16 %v639
        %v865 = vunpack.c.l.b16 %v640
        %v866 = vunpack.c.h.b16 %v640
        %v867 = vunpack.c.l.b16 %v641
        %v868 = vunpack.c.h.b16 %v641
        %v869 = vunpack.c.l.b16 %v642
        %v870 = vunpack.c.h.b16 %v642
        %v871 = vunpack.c.l.b16 %v643
        %v872 = vunpack.c.h.b16 %v643
        %v873 = vunpack.c.l.b16 %v644
        %v874 = vunpack.c.h.b16 %v644
        %v875 = vunpack.c.l.b16 %v645
        %v876 = vunpack.c.h.b16 %v645
        %v877 = vunpack.c.l.b16 %v646
        %v878 = vunpack.c.h.b16 %v646
        %v879 = vunpack.c.l.b16 %v647
        %v880 = vunpack.c.h.b16 %v647
        %v881 = vunpack.c.l.b16 %v648
        %v882 = vunpack.c.h.b16 %v648
        %v883 = vunpack.c.l.b16 %v649
        %v884 = vunpack.c.h.b16 %v649
        %v885 = vunpack.c.l.b16 %v650
        %v886 = vunpack.c.h.b16 %v650
        %v887 = vunpack.c.l.b16 %v651
        %v888 = vunpack.c.h.b16 %v651
        %v889 = vunpack.c.l.b16 %v652
        %v890 = vunpack.c.h.b16 %v652
        %v891 = vunpack.c.l.b16 %v653
        %v892 = vunpack.c.h.b16 %v653
        %v893 = vunpack.c.l.b16 %v654
        %v894 = vunpack.c.h.b16 %v654
        %v895 = vunpack.c.l.b16 %v655
        %v896 = vunpack.c.h.b16 %v655
        %v897 = vunpack.c.l.b16 %v656
        %v898 = vunpack.c.h.b16 %v656
        %v899 = vunpack.c.l.b16 %v657
        %v900 = vunpack.c.h.b16 %v657
        %v901 = vunpack.c.l.b16 %v658
        %v902 = vunpack.c.h.b16 %v658
        %v903 = vunpack.c.l.b16 %v659
        %v904 = vunpack.c.h.b16 %v659
        %v905 = vunpack.c.l.b16 %v660
        %v906 = vunpack.c.h.b16 %v660
        %v907 = vunpack.c.l.b16 %v661
        %v908 = vunpack.c.h.b16 %v661
        %v909 = vunpack.c.l.b16 %v662
        %v910 = vunpack.c.h.b16 %v662
        %v911 = vunpack.c.l.b16 %v663
        %v912 = vunpack.c.h.b16 %v663
        %v913 = vunpack.c.l.b16 %v664
        %v914 = vunpack.c.h.b16 %v664
        %v915 = vunpack.c.l.b16 %v665
        %v916 = vunpack.c.h.b16 %v665
        %v917 = vunpack.c.l.b16 %v666
        %v918 = vunpack.c.h.b16 %v666
        %v919 = vunpack.c.l.b16 %v667
        %v920 = vunpack.c.h.b16 %v667
        %v921 = vunpack.c.l.b16 %v668
        %v922 = vunpack.c.h.b16 %v668
        %v923 = vunpack.c.l.b16 %v669
        %v924 = vunpack.c.h.b16 %v669
        %v925 = vunpack.c.l.b16 %v670
        %v926 = vunpack.c.h.b16 %v670
        %v927 = vunpack.c.l.b16 %v671
        %v928 = vunpack.c.h.b16 %v671
        %v929 = vunpack.c.l.b16 %v672
        %v930 = vunpack.c.h.b16 %v672
        %v931 = vunpack.c.l.b16 %v673
        %v932 = vunpack.c.h.b16 %v673
        %v933 = vunpack.c.l.b16 %v674
        %v934 = vunpack.c.h.b16 %v674
        %v935 = vunpack.c.l.b16 %v675
        %v936 = vunpack.c.h.b16 %v675
        %v937 = vunpack.c.l.b16 %v676
        %v938 = vunpack.c.h.b16 %v676
        %v939 = vunpack.c.l.b16 %v677
        %v940 = vunpack.c.h.b16 %v677
        %v941 = vunpack.c.l.b16 %v678
        %v942 = vunpack.c.h.b16 %v678
        %v943 = vunpack.c.l.b16 %v679
        %v944 = vunpack.c.h.b16 %v679
        %v945 = vunpack.c.l.b16 %v680
        %v946 = vunpack.c.h.b16 %v680
        %v947 = vunpack.c.l.b16 %v681
        %v948 = vunpack.c.h.b16 %v681
        %v949 = vunpack.c.l.b16 %v682
        %v950 = vunpack.c.h.b16 %v682
        %v951 = vunpack.c.l.b16 %v683
        %v952 = vunpack.c.h.b16 %v683
        %v953 = vunpack.c.l.b16 %v684
        %v954 = vunpack.c.h.b16 %v684
        %v955 = vunpack.c.l.b16 %v685
        %v956 = vunpack.c.h.b16 %v685
        %v957 = vunpack.c.l.b16 %v686
        %v958 = vunpack.c.h.b16 %v686
        %v959 = vunpack.c.l.b16 %v687
        %v960 = vunpack.c.h.b16 %v687
        %v961 = vunpack.c.l.b16 %v688
        %v962 = vunpack.c.h.b16 %v688
        %v963 = vunpack.c.l.b16 %v689
        %v964 = vunpack.c.h.b16 %v689
        %v965 = vunpack.c.l.b16 %v690
        %v966 = vunpack.c.h.b16 %v690
        %v967 = vunpack.c.l.b16 %v691
        %v968 = vunpack.c.h.b16 %v691
        %v969 = vunpack.c.l.b16 %v692
        %v970 = vunpack.c.h.b16 %v692
        %v971 = vunpack.c.l.b16 %v693
        %v972 = vunpack.c.h.b16 %v693
        %v973 = vunpack.c.l.b16 %v694
        %v974 = vunpack.c.h.b16 %v694
        %v975 = vunpack.c.l.b16 %v695
        %v976 = vunpack.c.h.b16 %v695
        %v977 = vunpack.c.l.b16 %v696
        %v978 = vunpack.c.h.b16 %v696
        %v979 = vunpack.c.l.b16 %v697
        %v980 = vunpack.c.h.b16 %v697
        %v981 = vunpack.c.l.b16 %v698
        %v982 = vunpack.c.h.b16 %v698
        %v983 = vunpack.c.l.b16 %v699
        %v984 = vunpack.c.h.b16 %v699
        %v985 = vunpack.c.l.b16 %v700
        %v986 = vunpack.c.h.b16 %v700
        %v987 = vunpack.c.l.b16 %v701
        %v988 = vunpack.c.h.b16 %v701
        %v989 = vunpack.c.l.b16 %v702
        %v990 = vunpack.c.h.b16 %v702
        %v991 = vunpack.c.l.b16 %v703
        %v992 = vunpack.c.h.b16 %v703
        %v993 = vunpack.c.l.b16 %v704
        %v994 = vunpack.c.h.b16 %v704
        %v995 = vunpack.c.l.b16 %v705
        %v996 = vunpack.c.h.b16 %v705
        %v997 = vunpack.c.l.b16 %v706
        %v998 = vunpack.c.h.b16 %v706
        %v999 = vunpack.c.l.b16 %v707
        %v1000 = vunpack.c.h.b16 %v707
        %v1001 = vunpack.c.l.b16 %v708
        %v1002 = vunpack.c.h.b16 %v708
        %v1003 = vunpack.c.l.b16 %v709
        %v1004 = vunpack.c.h.b16 %v709
        %v1005 = vunpack.c.l.b16 %v710
        %v1006 = vunpack.c.h.b16 %v710
        %v1007 = vunpack.c.l.b16 %v711
        %v1008 = vunpack.c.h.b16 %v711
        %v1009 = vunpack.c.l.b16 %v712
        %v1010 = vunpack.c.h.b16 %v712
        %v1011 = vunpack.c.l.b16 %v713
        %v1012 = vunpack.c.h.b16 %v713
        %v1013 = vunpack.c.l.b16 %v714
        %v1014 = vunpack.c.h.b16 %v714
        %v1015 = vunpack.c.l.b16 %v715
        %v1016 = vunpack.c.h.b16 %v715
        %v1017 = vunpack.c.l.b16 %v716
        %v1018 = vunpack.c.h.b16 %v716
        %v1019 = vpack.c.b16 %v833, %v827
        %v1020 = vpack.c.b16 %v834, %v828
        %v1021 = vpack.c.b16 %v835, %v829
        %v1022 = vpack.c.b16 %v836, %v830
        %v1023 = vpack.c.b16 %v837, %v831
        %v1024 = vpack.c.b16 %v838, %v832
        %v1025 = vpack.c.b16 %v845, %v839
        %v1026 = vpack.c.b16 %v846, %v840
        %v1027 = vpack.c.b16 %v847, %v841
        %v1028 = vpack.c.b16 %v848, %v842
        %v1029 = vpack.c.b16 %v849, %v843
        %v1030 = vpack.c.b16 %v850, %v844
        %v1031 = vpack.c.b16 %v857, %v851
        %v1032 = vpack.c.b16 %v858, %v852
        %v1033 = vpack.c.b16 %v859, %v853
        %v1034 = vpack.c.b16 %v860, %v854
        %v1035 = vpack.c.b16 %v861, %v855
        %v1036 = vpack.c.b16 %v862, %v856
        %v1037 = vpack.c.b16 %v869, %v863
        %v1038 = vpack.c.b16 %v870, %v864
        %v1039 = vpack.c.b16 %v871, %v865
        %v1040 = vpack.c.b16 %v872, %v866
        %v1041 = vpack.c.b16 %v873, %v867
        %v1042 = vpack.c.b16 %v874, %v868
        %v1043 = vpack.c.b16 %v881, %v875
        %v1044 = vpack.c.b16 %v882, %v876
        %v1045 = vpack.c.b16 %v883, %v877
        %v1046 = vpack.c.b16 %v884, %v878
        %v1047 = vpack.c.b16 %v885, %v879
        %v1048 = vpack.c.b16 %v886, %v880
        %v1049 = vpack.c.b16 %v893, %v887
        %v1050 = vpack.c.b16 %v894, %v888
        %v1051 = vpack.c.b16 %v895, %v889
        %v1052 = vpack.c.b16 %v896, %v890
        %v1053 = vpack.c.b16 %v897, %v891
        %v1054 = vpack.c.b16 %v898, %v892
        %v1055 = vpack.c.b16 %v905, %v899
        %v1056 = vpack.c.b16 %v906, %v900
        %v1057 = vpack.c.b16 %v907, %v901
        %v1058 = vpack.c.b16 %v908, %v902
        %v1059 = vpack.c.b16 %v909, %v903
        %v1060 = vpack.c.b16 %v910, %v904
        %v1061 = vpack.c.b16 %v917, %v911
        %v1062 = vpack.c.b16 %v918, %v912
        %v1063 = vpack.c.b16 %v919, %v913
        %v1064 = vpack.c.b16 %v920, %v914
        %v1065 = vpack.c.b16 %v921, %v915
        %v1066 = vpack.c.b16 %v922, %v916
        %v1067 = vpack.c.b16 %v929, %v923
        %v1068 = vpack.c.b16 %v930, %v924
        %v1069 = vpack.c.b16 %v931, %v925
        %v1070 = vpack.c.b16 %v932, %v926
        %v1071 = vpack.c.b16 %v933, %v927
        %v1072 = vpack.c.b16 %v934, %v928
        %v1073 = vpack.c.b16 %v941, %v935
        %v1074 = vpack.c.b16 %v942, %v936
        %v1075 = vpack.c.b16 %v943, %v937
        %v1076 = vpack.c.b16 %v944, %v938
        %v1077 = vpack.c.b16 %v945, %v939
        %v1078 = vpack.c.b16 %v946, %v940
        %v1079 = vpack.c.b16 %v953, %v947
        %v1080 = vpack.c.b16 %v954, %v948
        %v1081 = vpack.c.b16 %v955, %v949
        %v1082 = vpack.c.b16 %v956, %v950
        %v1083 = vpack.c.b16 %v957, %v951
        %v1084 = vpack.c.b16 %v958, %v952
        %v1085 = vpack.c.b16 %v965, %v959
        %v1086 = vpack.c.b16 %v966, %v960
        %v1087 = vpack.c.b16 %v967, %v961
        %v1088 = vpack.c.b16 %v968, %v962
        %v1089 = vpack.c.b16 %v969, %v963
        %v1090 = vpack.c.b16 %v970, %v964
        %v1091 = vpack.c.b16 %v977, %v971
        %v1092 = vpack.c.b16 %v978, %v972
        %v1093 = vpack.c.b16 %v979, %v973
        %v1094 = vpack.c.b16 %v980, %v974
        %v1095 = vpack.c.b16 %v981, %v975
        %v1096 = vpack.c.b16 %v982, %v976
        %v1097 = vpack.c.b16 %v989, %v983
        %v1098 = vpack.c.b16 %v990, %v984
        %v1099 = vpack.c.b16 %v991, %v985
        %v1100 = vpack.c.b16 %v992, %v986
        %v1101 = vpack.c.b16 %v993, %v987
        %v1102 = vpack.c.b16 %v994, %v988
        %v1103 = vpack.c.b16 %v1001, %v995
        %v1104 = vpack.c.b16 %v1002, %v996
        %v1105 = vpack.c.b16 %v1003, %v997
        %v1106 = vpack.c.b16 %v1004, %v998
        %v1107 = vpack.c.b16 %v1005, %v999
        %v1108 = vpack.c.b16 %v1006, %v1000
        %v1109 = vpack.c.b16 %v1013, %v1007
        %v1110 = vpack.c.b16 %v1014, %v1008
        %v1111 = vpack.c.b16 %v1015, %v1009
        %v1112 = vpack.c.b16 %v1016, %v1010
        %v1113 = vpack.c.b16 %v1017, %v1011
        %v1114 = vpack.c.b16 %v1018, %v1012
        %1211 = vmatpush.bf16.msra.mxu0 %v1061
        %1212 = vmatpush.bf16.msra.mxu0 %v1055
        %1213 = vmatpush.bf16.msra.mxu0 %v1049
        %1214 = vmatpush.bf16.msra.mxu0 %v1043
        %1215 = vmatpush.bf16.msra.mxu0 %v1037
        %1216 = vmatpush.bf16.msra.mxu0 %v1031
        %1217 = vmatpush.bf16.msra.mxu0 %v1025
        %1218 = vmatpush.bf16.msra.mxu0 %v1019
        %1219 = vmatmul.bf16.gmra.mxu0 %v605
        %v1220 = vpop.f32.mrf.mxu0
        %v1221 = vadd.f32 %v719, %v1220
        %v1222 = vpop.f32.mrf.mxu0
        %v1223 = vadd.f32 %v719, %v1222
        %1224 = vmatmul.bf16.gmra.mxu0 %v607
        %v1225 = vpop.f32.mrf.mxu0
        %v1226 = vadd.f32 %v719, %v1225
        %v1227 = vpop.f32.mrf.mxu0
        %v1228 = vadd.f32 %v719, %v1227
        %1229 = vmatmul.bf16.gmra.mxu0 %v609
        %v1230 = vpop.f32.mrf.mxu0
        %v1231 = vadd.f32 %v719, %v1230
        %v1232 = vpop.f32.mrf.mxu0
        %v1233 = vadd.f32 %v719, %v1232
        %1234 = vmatmul.bf16.gmra.mxu0 %v611
        %v1235 = vpop.f32.mrf.mxu0
        %v1236 = vadd.f32 %v719, %v1235
        %v1237 = vpop.f32.mrf.mxu0
        %v1238 = vadd.f32 %v719, %v1237
        %1239 = vmatmul.bf16.gmra.mxu0 %v613
        %v1240 = vpop.f32.mrf.mxu0
        %v1241 = vadd.f32 %v719, %v1240
        %v1242 = vpop.f32.mrf.mxu0
        %v1243 = vadd.f32 %v719, %v1242
        %1244 = vmatmul.bf16.gmra.mxu0 %v615
        %v1245 = vpop.f32.mrf.mxu0
        %v1246 = vadd.f32 %v719, %v1245
        %v1247 = vpop.f32.mrf.mxu0
        %v1248 = vadd.f32 %v719, %v1247
        %1249 = vmatmul.bf16.gmra.mxu0 %v617
        %v1250 = vpop.f32.mrf.mxu0
        %v1251 = vadd.f32 %v719, %v1250
        %v1252 = vpop.f32.mrf.mxu0
        %v1253 = vadd.f32 %v719, %v1252
        %1254 = vmatmul.bf16.gmra.mxu0 %v619
        %v1255 = vpop.f32.mrf.mxu0
        %v1256 = vadd.f32 %v719, %v1255
        %v1257 = vpop.f32.mrf.mxu0
        %v1258 = vadd.f32 %v719, %v1257
        %1259 = vdwg.mxu0
        %1260 = vmatpush.bf16.msra.mxu0 %v1109
        %1261 = vmatpush.bf16.msra.mxu0 %v1103
        %1262 = vmatpush.bf16.msra.mxu0 %v1097
        %1263 = vmatpush.bf16.msra.mxu0 %v1091
        %1264 = vmatpush.bf16.msra.mxu0 %v1085
        %1265 = vmatpush.bf16.msra.mxu0 %v1079
        %1266 = vmatpush.bf16.msra.mxu0 %v1073
        %1267 = vmatpush.bf16.msra.mxu0 %v1067
        %1268 = vmatmul.bf16.gmra.mxu0 %v606
        %v1269 = vpop.f32.mrf.mxu0
        %v1270 = vadd.f32 %v1221, %v1269
        %v1271 = vpop.f32.mrf.mxu0
        %v1272 = vadd.f32 %v1223, %v1271
        %1273 = vmatmul.bf16.gmra.mxu0 %v608
        %v1274 = vpop.f32.mrf.mxu0
        %v1275 = vadd.f32 %v1226, %v1274
        %v1276 = vpop.f32.mrf.mxu0
        %v1277 = vadd.f32 %v1228, %v1276
        %1278 = vmatmul.bf16.gmra.mxu0 %v610
        %v1279 = vpop.f32.mrf.mxu0
        %v1280 = vadd.f32 %v1231, %v1279
        %v1281 = vpop.f32.mrf.mxu0
        %v1282 = vadd.f32 %v1233, %v1281
        %1283 = vmatmul.bf16.gmra.mxu0 %v612
        %v1284 = vpop.f32.mrf.mxu0
        %v1285 = vadd.f32 %v1236, %v1284
        %v1286 = vpop.f32.mrf.mxu0
        %v1287 = vadd.f32 %v1238, %v1286
        %1288 = vmatmul.bf16.gmra.mxu0 %v614
        %v1289 = vpop.f32.mrf.mxu0
        %v1290 = vadd.f32 %v1241, %v1289
        %v1291 = vpop.f32.mrf.mxu0
        %v1292 = vadd.f32 %v1243, %v1291
        %1293 = vmatmul.bf16.gmra.mxu0 %v616
        %v1294 = vpop.f32.mrf.mxu0
        %v1295 = vadd.f32 %v1246, %v1294
        %v1296 = vpop.f32.mrf.mxu0
        %v1297 = vadd.f32 %v1248, %v1296
        %1298 = vmatmul.bf16.gmra.mxu0 %v618
        %v1299 = vpop.f32.mrf.mxu0
        %v1300 = vadd.f32 %v1251, %v1299
        %v1301 = vpop.f32.mrf.mxu0
        %v1302 = vadd.f32 %v1253, %v1301
        %1303 = vmatmul.bf16.gmra.mxu0 %v620
        %v1304 = vpop.f32.mrf.mxu0
        %v1305 = vadd.f32 %v1256, %v1304
        %v1306 = vpop.f32.mrf.mxu0
        %v1307 = vadd.f32 %v1258, %v1306
        %1308 = vdwg.mxu0
        %1309 = vmatpush.bf16.msra.mxu0 %v1062
        %1310 = vmatpush.bf16.msra.mxu0 %v1056
        %1311 = vmatpush.bf16.msra.mxu0 %v1050
        %1312 = vmatpush.bf16.msra.mxu0 %v1044
        %1313 = vmatpush.bf16.msra.mxu0 %v1038
        %1314 = vmatpush.bf16.msra.mxu0 %v1032
        %1315 = vmatpush.bf16.msra.mxu0 %v1026
        %1316 = vmatpush.bf16.msra.mxu0 %v1020
        %1317 = vmatmul.bf16.gmra.mxu0 %v605
        %v1318 = vpop.f32.mrf.mxu0
        %v1319 = vadd.f32 %v720, %v1318
        %v1320 = vpop.f32.mrf.mxu0
        %v1321 = vadd.f32 %v720, %v1320
        %1322 = vmatmul.bf16.gmra.mxu0 %v607
        %v1323 = vpop.f32.mrf.mxu0
        %v1324 = vadd.f32 %v720, %v1323
        %v1325 = vpop.f32.mrf.mxu0
        %v1326 = vadd.f32 %v720, %v1325
        %1327 = vmatmul.bf16.gmra.mxu0 %v609
        %v1328 = vpop.f32.mrf.mxu0
        %v1329 = vadd.f32 %v720, %v1328
        %v1330 = vpop.f32.mrf.mxu0
        %v1331 = vadd.f32 %v720, %v1330
        %1332 = vmatmul.bf16.gmra.mxu0 %v611
        %v1333 = vpop.f32.mrf.mxu0
        %v1334 = vadd.f32 %v720, %v1333
        %v1335 = vpop.f32.mrf.mxu0
        %v1336 = vadd.f32 %v720, %v1335
        %1337 = vmatmul.bf16.gmra.mxu0 %v613
        %v1338 = vpop.f32.mrf.mxu0
        %v1339 = vadd.f32 %v720, %v1338
        %v1340 = vpop.f32.mrf.mxu0
        %v1341 = vadd.f32 %v720, %v1340
        %1342 = vmatmul.bf16.gmra.mxu0 %v615
        %v1343 = vpop.f32.mrf.mxu0
        %v1344 = vadd.f32 %v720, %v1343
        %v1345 = vpop.f32.mrf.mxu0
        %v1346 = vadd.f32 %v720, %v1345
        %1347 = vmatmul.bf16.gmra.mxu0 %v617
        %v1348 = vpop.f32.mrf.mxu0
        %v1349 = vadd.f32 %v720, %v1348
        %v1350 = vpop.f32.mrf.mxu0
        %v1351 = vadd.f32 %v720, %v1350
        %1352 = vmatmul.bf16.gmra.mxu0 %v619
        %v1353 = vpop.f32.mrf.mxu0
        %v1354 = vadd.f32 %v720, %v1353
        %v1355 = vpop.f32.mrf.mxu0
        %v1356 = vadd.f32 %v720, %v1355
        %1357 = vdwg.mxu0
        %1358 = vmatpush.bf16.msra.mxu0 %v1110
        %1359 = vmatpush.bf16.msra.mxu0 %v1104
        %1360 = vmatpush.bf16.msra.mxu0 %v1098
        %1361 = vmatpush.bf16.msra.mxu0 %v1092
        %1362 = vmatpush.bf16.msra.mxu0 %v1086
        %1363 = vmatpush.bf16.msra.mxu0 %v1080
        %1364 = vmatpush.bf16.msra.mxu0 %v1074
        %1365 = vmatpush.bf16.msra.mxu0 %v1068
        %1366 = vmatmul.bf16.gmra.mxu0 %v606
        %v1367 = vpop.f32.mrf.mxu0
        %v1368 = vadd.f32 %v1319, %v1367
        %v1369 = vpop.f32.mrf.mxu0
        %v1370 = vadd.f32 %v1321, %v1369
        %1371 = vmatmul.bf16.gmra.mxu0 %v608
        %v1372 = vpop.f32.mrf.mxu0
        %v1373 = vadd.f32 %v1324, %v1372
        %v1374 = vpop.f32.mrf.mxu0
        %v1375 = vadd.f32 %v1326, %v1374
        %1376 = vmatmul.bf16.gmra.mxu0 %v610
        %v1377 = vpop.f32.mrf.mxu0
        %v1378 = vadd.f32 %v1329, %v1377
        %v1379 = vpop.f32.mrf.mxu0
        %v1380 = vadd.f32 %v1331, %v1379
        %1381 = vmatmul.bf16.gmra.mxu0 %v612
        %v1382 = vpop.f32.mrf.mxu0
        %v1383 = vadd.f32 %v1334, %v1382
        %v1384 = vpop.f32.mrf.mxu0
        %v1385 = vadd.f32 %v1336, %v1384
        %1386 = vmatmul.bf16.gmra.mxu0 %v614
        %v1387 = vpop.f32.mrf.mxu0
        %v1388 = vadd.f32 %v1339, %v1387
        %v1389 = vpop.f32.mrf.mxu0
        %v1390 = vadd.f32 %v1341, %v1389
        %1391 = vmatmul.bf16.gmra.mxu0 %v616
        %v1392 = vpop.f32.mrf.mxu0
        %v1393 = vadd.f32 %v1344, %v1392
        %v1394 = vpop.f32.mrf.mxu0
        %v1395 = vadd.f32 %v1346, %v1394
        %1396 = vmatmul.bf16.gmra.mxu0 %v618
        %v1397 = vpop.f32.mrf.mxu0
        %v1398 = vadd.f32 %v1349, %v1397
        %v1399 = vpop.f32.mrf.mxu0
        %v1400 = vadd.f32 %v1351, %v1399
        %1401 = vmatmul.bf16.gmra.mxu0 %v620
        %v1402 = vpop.f32.mrf.mxu0
        %v1403 = vadd.f32 %v1354, %v1402
        %v1404 = vpop.f32.mrf.mxu0
        %v1405 = vadd.f32 %v1356, %v1404
        %1406 = vdwg.mxu0
        %1407 = vmatpush.bf16.msra.mxu0 %v1063
        %1408 = vmatpush.bf16.msra.mxu0 %v1057
        %1409 = vmatpush.bf16.msra.mxu0 %v1051
        %1410 = vmatpush.bf16.msra.mxu0 %v1045
        %1411 = vmatpush.bf16.msra.mxu0 %v1039
        %1412 = vmatpush.bf16.msra.mxu0 %v1033
        %1413 = vmatpush.bf16.msra.mxu0 %v1027
        %1414 = vmatpush.bf16.msra.mxu0 %v1021
        %1415 = vmatmul.bf16.gmra.mxu0 %v605
        %v1416 = vpop.f32.mrf.mxu0
        %v1417 = vadd.f32 %v721, %v1416
        %v1418 = vpop.f32.mrf.mxu0
        %v1419 = vadd.f32 %v721, %v1418
        %1420 = vmatmul.bf16.gmra.mxu0 %v607
        %v1421 = vpop.f32.mrf.mxu0
        %v1422 = vadd.f32 %v721, %v1421
        %v1423 = vpop.f32.mrf.mxu0
        %v1424 = vadd.f32 %v721, %v1423
        %1425 = vmatmul.bf16.gmra.mxu0 %v609
        %v1426 = vpop.f32.mrf.mxu0
        %v1427 = vadd.f32 %v721, %v1426
        %v1428 = vpop.f32.mrf.mxu0
        %v1429 = vadd.f32 %v721, %v1428
        %1430 = vmatmul.bf16.gmra.mxu0 %v611
        %v1431 = vpop.f32.mrf.mxu0
        %v1432 = vadd.f32 %v721, %v1431
        %v1433 = vpop.f32.mrf.mxu0
        %v1434 = vadd.f32 %v721, %v1433
        %1435 = vmatmul.bf16.gmra.mxu0 %v613
        %v1436 = vpop.f32.mrf.mxu0
        %v1437 = vadd.f32 %v721, %v1436
        %v1438 = vpop.f32.mrf.mxu0
        %v1439 = vadd.f32 %v721, %v1438
        %1440 = vmatmul.bf16.gmra.mxu0 %v615
        %v1441 = vpop.f32.mrf.mxu0
        %v1442 = vadd.f32 %v721, %v1441
        %v1443 = vpop.f32.mrf.mxu0
        %v1444 = vadd.f32 %v721, %v1443
        %1445 = vmatmul.bf16.gmra.mxu0 %v617
        %v1446 = vpop.f32.mrf.mxu0
        %v1447 = vadd.f32 %v721, %v1446
        %v1448 = vpop.f32.mrf.mxu0
        %v1449 = vadd.f32 %v721, %v1448
        %1450 = vmatmul.bf16.gmra.mxu0 %v619
        %v1451 = vpop.f32.mrf.mxu0
        %v1452 = vadd.f32 %v721, %v1451
        %v1453 = vpop.f32.mrf.mxu0
        %v1454 = vadd.f32 %v721, %v1453
        %1455 = vdwg.mxu0
        %1456 = vmatpush.bf16.msra.mxu0 %v1111
        %1457 = vmatpush.bf16.msra.mxu0 %v1105
        %1458 = vmatpush.bf16.msra.mxu0 %v1099
        %1459 = vmatpush.bf16.msra.mxu0 %v1093
        %1460 = vmatpush.bf16.msra.mxu0 %v1087
        %1461 = vmatpush.bf16.msra.mxu0 %v1081
        %1462 = vmatpush.bf16.msra.mxu0 %v1075
        %1463 = vmatpush.bf16.msra.mxu0 %v1069
        %1464 = vmatmul.bf16.gmra.mxu0 %v606
        %v1465 = vpop.f32.mrf.mxu0
        %v1466 = vadd.f32 %v1417, %v1465
        %v1467 = vpop.f32.mrf.mxu0
        %v1468 = vadd.f32 %v1419, %v1467
        %1469 = vmatmul.bf16.gmra.mxu0 %v608
        %v1470 = vpop.f32.mrf.mxu0
        %v1471 = vadd.f32 %v1422, %v1470
        %v1472 = vpop.f32.mrf.mxu0
        %v1473 = vadd.f32 %v1424, %v1472
        %1474 = vmatmul.bf16.gmra.mxu0 %v610
        %v1475 = vpop.f32.mrf.mxu0
        %v1476 = vadd.f32 %v1427, %v1475
        %v1477 = vpop.f32.mrf.mxu0
        %v1478 = vadd.f32 %v1429, %v1477
        %1479 = vmatmul.bf16.gmra.mxu0 %v612
        %v1480 = vpop.f32.mrf.mxu0
        %v1481 = vadd.f32 %v1432, %v1480
        %v1482 = vpop.f32.mrf.mxu0
        %v1483 = vadd.f32 %v1434, %v1482
        %1484 = vmatmul.bf16.gmra.mxu0 %v614
        %v1485 = vpop.f32.mrf.mxu0
        %v1486 = vadd.f32 %v1437, %v1485
        %v1487 = vpop.f32.mrf.mxu0
        %v1488 = vadd.f32 %v1439, %v1487
        %1489 = vmatmul.bf16.gmra.mxu0 %v616
        %v1490 = vpop.f32.mrf.mxu0
        %v1491 = vadd.f32 %v1442, %v1490
        %v1492 = vpop.f32.mrf.mxu0
        %v1493 = vadd.f32 %v1444, %v1492
        %1494 = vmatmul.bf16.gmra.mxu0 %v618
        %v1495 = vpop.f32.mrf.mxu0
        %v1496 = vadd.f32 %v1447, %v1495
        %v1497 = vpop.f32.mrf.mxu0
        %v1498 = vadd.f32 %v1449, %v1497
        %1499 = vmatmul.bf16.gmra.mxu0 %v620
        %v1500 = vpop.f32.mrf.mxu0
        %v1501 = vadd.f32 %v1452, %v1500
        %v1502 = vpop.f32.mrf.mxu0
        %v1503 = vadd.f32 %v1454, %v1502
        %1504 = vdwg.mxu0
        %1505 = vmatpush.bf16.msra.mxu0 %v1064
        %1506 = vmatpush.bf16.msra.mxu0 %v1058
        %1507 = vmatpush.bf16.msra.mxu0 %v1052
        %1508 = vmatpush.bf16.msra.mxu0 %v1046
        %1509 = vmatpush.bf16.msra.mxu0 %v1040
        %1510 = vmatpush.bf16.msra.mxu0 %v1034
        %1511 = vmatpush.bf16.msra.mxu0 %v1028
        %1512 = vmatpush.bf16.msra.mxu0 %v1022
        %1513 = vmatmul.bf16.gmra.mxu0 %v605
        %v1514 = vpop.f32.mrf.mxu0
        %v1515 = vadd.f32 %v722, %v1514
        %v1516 = vpop.f32.mrf.mxu0
        %v1517 = vadd.f32 %v722, %v1516
        %1518 = vmatmul.bf16.gmra.mxu0 %v607
        %v1519 = vpop.f32.mrf.mxu0
        %v1520 = vadd.f32 %v722, %v1519
        %v1521 = vpop.f32.mrf.mxu0
        %v1522 = vadd.f32 %v722, %v1521
        %1523 = vmatmul.bf16.gmra.mxu0 %v609
        %v1524 = vpop.f32.mrf.mxu0
        %v1525 = vadd.f32 %v722, %v1524
        %v1526 = vpop.f32.mrf.mxu0
        %v1527 = vadd.f32 %v722, %v1526
        %1528 = vmatmul.bf16.gmra.mxu0 %v611
        %v1529 = vpop.f32.mrf.mxu0
        %v1530 = vadd.f32 %v722, %v1529
        %v1531 = vpop.f32.mrf.mxu0
        %v1532 = vadd.f32 %v722, %v1531
        %1533 = vmatmul.bf16.gmra.mxu0 %v613
        %v1534 = vpop.f32.mrf.mxu0
        %v1535 = vadd.f32 %v722, %v1534
        %v1536 = vpop.f32.mrf.mxu0
        %v1537 = vadd.f32 %v722, %v1536
        %1538 = vmatmul.bf16.gmra.mxu0 %v615
        %v1539 = vpop.f32.mrf.mxu0
        %v1540 = vadd.f32 %v722, %v1539
        %v1541 = vpop.f32.mrf.mxu0
        %v1542 = vadd.f32 %v722, %v1541
        %1543 = vmatmul.bf16.gmra.mxu0 %v617
        %v1544 = vpop.f32.mrf.mxu0
        %v1545 = vadd.f32 %v722, %v1544
        %v1546 = vpop.f32.mrf.mxu0
        %v1547 = vadd.f32 %v722, %v1546
        %1548 = vmatmul.bf16.gmra.mxu0 %v619
        %v1549 = vpop.f32.mrf.mxu0
        %v1550 = vadd.f32 %v722, %v1549
        %v1551 = vpop.f32.mrf.mxu0
        %v1552 = vadd.f32 %v722, %v1551
        %1553 = vdwg.mxu0
        %1554 = vmatpush.bf16.msra.mxu0 %v1112
        %1555 = vmatpush.bf16.msra.mxu0 %v1106
        %1556 = vmatpush.bf16.msra.mxu0 %v1100
        %1557 = vmatpush.bf16.msra.mxu0 %v1094
        %1558 = vmatpush.bf16.msra.mxu0 %v1088
        %1559 = vmatpush.bf16.msra.mxu0 %v1082
        %1560 = vmatpush.bf16.msra.mxu0 %v1076
        %1561 = vmatpush.bf16.msra.mxu0 %v1070
        %1562 = vmatmul.bf16.gmra.mxu0 %v606
        %v1563 = vpop.f32.mrf.mxu0
        %v1564 = vadd.f32 %v1515, %v1563
        %v1565 = vpop.f32.mrf.mxu0
        %v1566 = vadd.f32 %v1517, %v1565
        %1567 = vmatmul.bf16.gmra.mxu0 %v608
        %v1568 = vpop.f32.mrf.mxu0
        %v1569 = vadd.f32 %v1520, %v1568
        %v1570 = vpop.f32.mrf.mxu0
        %v1571 = vadd.f32 %v1522, %v1570
        %1572 = vmatmul.bf16.gmra.mxu0 %v610
        %v1573 = vpop.f32.mrf.mxu0
        %v1574 = vadd.f32 %v1525, %v1573
        %v1575 = vpop.f32.mrf.mxu0
        %v1576 = vadd.f32 %v1527, %v1575
        %1577 = vmatmul.bf16.gmra.mxu0 %v612
        %v1578 = vpop.f32.mrf.mxu0
        %v1579 = vadd.f32 %v1530, %v1578
        %v1580 = vpop.f32.mrf.mxu0
        %v1581 = vadd.f32 %v1532, %v1580
        %1582 = vmatmul.bf16.gmra.mxu0 %v614
        %v1583 = vpop.f32.mrf.mxu0
        %v1584 = vadd.f32 %v1535, %v1583
        %v1585 = vpop.f32.mrf.mxu0
        %v1586 = vadd.f32 %v1537, %v1585
        %1587 = vmatmul.bf16.gmra.mxu0 %v616
        %v1588 = vpop.f32.mrf.mxu0
        %v1589 = vadd.f32 %v1540, %v1588
        %v1590 = vpop.f32.mrf.mxu0
        %v1591 = vadd.f32 %v1542, %v1590
        %1592 = vmatmul.bf16.gmra.mxu0 %v618
        %v1593 = vpop.f32.mrf.mxu0
        %v1594 = vadd.f32 %v1545, %v1593
        %v1595 = vpop.f32.mrf.mxu0
        %v1596 = vadd.f32 %v1547, %v1595
        %1597 = vmatmul.bf16.gmra.mxu0 %v620
        %v1598 = vpop.f32.mrf.mxu0
        %v1599 = vadd.f32 %v1550, %v1598
        %v1600 = vpop.f32.mrf.mxu0
        %v1601 = vadd.f32 %v1552, %v1600
        %1602 = vdwg.mxu0
        %1603 = vmatpush.bf16.msra.mxu0 %v1065
        %1604 = vmatpush.bf16.msra.mxu0 %v1059
        %1605 = vmatpush.bf16.msra.mxu0 %v1053
        %1606 = vmatpush.bf16.msra.mxu0 %v1047
        %1607 = vmatpush.bf16.msra.mxu0 %v1041
        %1608 = vmatpush.bf16.msra.mxu0 %v1035
        %1609 = vmatpush.bf16.msra.mxu0 %v1029
        %1610 = vmatpush.bf16.msra.mxu0 %v1023
        %1611 = vmatmul.bf16.gmra.mxu0 %v605
        %v1612 = vpop.f32.mrf.mxu0
        %v1613 = vadd.f32 %v723, %v1612
        %v1614 = vpop.f32.mrf.mxu0
        %v1615 = vadd.f32 %v723, %v1614
        %1616 = vmatmul.bf16.gmra.mxu0 %v607
        %v1617 = vpop.f32.mrf.mxu0
        %v1618 = vadd.f32 %v723, %v1617
        %v1619 = vpop.f32.mrf.mxu0
        %v1620 = vadd.f32 %v723, %v1619
        %1621 = vmatmul.bf16.gmra.mxu0 %v609
        %v1622 = vpop.f32.mrf.mxu0
        %v1623 = vadd.f32 %v723, %v1622
        %v1624 = vpop.f32.mrf.mxu0
        %v1625 = vadd.f32 %v723, %v1624
        %1626 = vmatmul.bf16.gmra.mxu0 %v611
        %v1627 = vpop.f32.mrf.mxu0
        %v1628 = vadd.f32 %v723, %v1627
        %v1629 = vpop.f32.mrf.mxu0
        %v1630 = vadd.f32 %v723, %v1629
        %1631 = vmatmul.bf16.gmra.mxu0 %v613
        %v1632 = vpop.f32.mrf.mxu0
        %v1633 = vadd.f32 %v723, %v1632
        %v1634 = vpop.f32.mrf.mxu0
        %v1635 = vadd.f32 %v723, %v1634
        %1636 = vmatmul.bf16.gmra.mxu0 %v615
        %v1637 = vpop.f32.mrf.mxu0
        %v1638 = vadd.f32 %v723, %v1637
        %v1639 = vpop.f32.mrf.mxu0
        %v1640 = vadd.f32 %v723, %v1639
        %1641 = vmatmul.bf16.gmra.mxu0 %v617
        %v1642 = vpop.f32.mrf.mxu0
        %v1643 = vadd.f32 %v723, %v1642
        %v1644 = vpop.f32.mrf.mxu0
        %v1645 = vadd.f32 %v723, %v1644
        %1646 = vmatmul.bf16.gmra.mxu0 %v619
        %v1647 = vpop.f32.mrf.mxu0
        %v1648 = vadd.f32 %v723, %v1647
        %v1649 = vpop.f32.mrf.mxu0
        %v1650 = vadd.f32 %v723, %v1649
        %1651 = vdwg.mxu0
        %1652 = vmatpush.bf16.msra.mxu0 %v1113
        %1653 = vmatpush.bf16.msra.mxu0 %v1107
        %1654 = vmatpush.bf16.msra.mxu0 %v1101
        %1655 = vmatpush.bf16.msra.mxu0 %v1095
        %1656 = vmatpush.bf16.msra.mxu0 %v1089
        %1657 = vmatpush.bf16.msra.mxu0 %v1083
        %1658 = vmatpush.bf16.msra.mxu0 %v1077
        %1659 = vmatpush.bf16.msra.mxu0 %v1071
        %1660 = vmatmul.bf16.gmra.mxu0 %v606
        %v1661 = vpop.f32.mrf.mxu0
        %v1662 = vadd.f32 %v1613, %v1661
        %v1663 = vpop.f32.mrf.mxu0
        %v1664 = vadd.f32 %v1615, %v1663
        %1665 = vmatmul.bf16.gmra.mxu0 %v608
        %v1666 = vpop.f32.mrf.mxu0
        %v1667 = vadd.f32 %v1618, %v1666
        %v1668 = vpop.f32.mrf.mxu0
        %v1669 = vadd.f32 %v1620, %v1668
        %1670 = vmatmul.bf16.gmra.mxu0 %v610
        %v1671 = vpop.f32.mrf.mxu0
        %v1672 = vadd.f32 %v1623, %v1671
        %v1673 = vpop.f32.mrf.mxu0
        %v1674 = vadd.f32 %v1625, %v1673
        %1675 = vmatmul.bf16.gmra.mxu0 %v612
        %v1676 = vpop.f32.mrf.mxu0
        %v1677 = vadd.f32 %v1628, %v1676
        %v1678 = vpop.f32.mrf.mxu0
        %v1679 = vadd.f32 %v1630, %v1678
        %1680 = vmatmul.bf16.gmra.mxu0 %v614
        %v1681 = vpop.f32.mrf.mxu0
        %v1682 = vadd.f32 %v1633, %v1681
        %v1683 = vpop.f32.mrf.mxu0
        %v1684 = vadd.f32 %v1635, %v1683
        %1685 = vmatmul.bf16.gmra.mxu0 %v616
        %v1686 = vpop.f32.mrf.mxu0
        %v1687 = vadd.f32 %v1638, %v1686
        %v1688 = vpop.f32.mrf.mxu0
        %v1689 = vadd.f32 %v1640, %v1688
        %1690 = vmatmul.bf16.gmra.mxu0 %v618
        %v1691 = vpop.f32.mrf.mxu0
        %v1692 = vadd.f32 %v1643, %v1691
        %v1693 = vpop.f32.mrf.mxu0
        %v1694 = vadd.f32 %v1645, %v1693
        %1695 = vmatmul.bf16.gmra.mxu0 %v620
        %v1696 = vpop.f32.mrf.mxu0
        %v1697 = vadd.f32 %v1648, %v1696
        %v1698 = vpop.f32.mrf.mxu0
        %v1699 = vadd.f32 %v1650, %v1698
        %1700 = vdwg.mxu0
        %1701 = vmatpush.bf16.msra.mxu0 %v1066
        %1702 = vmatpush.bf16.msra.mxu0 %v1060
        %1703 = vmatpush.bf16.msra.mxu0 %v1054
        %1704 = vmatpush.bf16.msra.mxu0 %v1048
        %1705 = vmatpush.bf16.msra.mxu0 %v1042
        %1706 = vmatpush.bf16.msra.mxu0 %v1036
        %1707 = vmatpush.bf16.msra.mxu0 %v1030
        %1708 = vmatpush.bf16.msra.mxu0 %v1024
        %1709 = vmatmul.bf16.gmra.mxu0 %v605
        %v1710 = vpop.f32.mrf.mxu0
        %v1711 = vadd.f32 %v724, %v1710
        %v1712 = vpop.f32.mrf.mxu0
        %v1713 = vadd.f32 %v724, %v1712
        %1714 = vmatmul.bf16.gmra.mxu0 %v607
        %v1715 = vpop.f32.mrf.mxu0
        %v1716 = vadd.f32 %v724, %v1715
        %v1717 = vpop.f32.mrf.mxu0
        %v1718 = vadd.f32 %v724, %v1717
        %1719 = vmatmul.bf16.gmra.mxu0 %v609
        %v1720 = vpop.f32.mrf.mxu0
        %v1721 = vadd.f32 %v724, %v1720
        %v1722 = vpop.f32.mrf.mxu0
        %v1723 = vadd.f32 %v724, %v1722
        %1724 = vmatmul.bf16.gmra.mxu0 %v611
        %v1725 = vpop.f32.mrf.mxu0
        %v1726 = vadd.f32 %v724, %v1725
        %v1727 = vpop.f32.mrf.mxu0
        %v1728 = vadd.f32 %v724, %v1727
        %1729 = vmatmul.bf16.gmra.mxu0 %v613
        %v1730 = vpop.f32.mrf.mxu0
        %v1731 = vadd.f32 %v724, %v1730
        %v1732 = vpop.f32.mrf.mxu0
        %v1733 = vadd.f32 %v724, %v1732
        %1734 = vmatmul.bf16.gmra.mxu0 %v615
        %v1735 = vpop.f32.mrf.mxu0
        %v1736 = vadd.f32 %v724, %v1735
        %v1737 = vpop.f32.mrf.mxu0
        %v1738 = vadd.f32 %v724, %v1737
        %1739 = vmatmul.bf16.gmra.mxu0 %v617
        %v1740 = vpop.f32.mrf.mxu0
        %v1741 = vadd.f32 %v724, %v1740
        %v1742 = vpop.f32.mrf.mxu0
        %v1743 = vadd.f32 %v724, %v1742
        %1744 = vmatmul.bf16.gmra.mxu0 %v619
        %v1745 = vpop.f32.mrf.mxu0
        %v1746 = vadd.f32 %v724, %v1745
        %v1747 = vpop.f32.mrf.mxu0
        %v1748 = vadd.f32 %v724, %v1747
        %1749 = vdwg.mxu0
        %1750 = vmatpush.bf16.msra.mxu0 %v1114
        %1751 = vmatpush.bf16.msra.mxu0 %v1108
        %1752 = vmatpush.bf16.msra.mxu0 %v1102
        %1753 = vmatpush.bf16.msra.mxu0 %v1096
        %1754 = vmatpush.bf16.msra.mxu0 %v1090
        %1755 = vmatpush.bf16.msra.mxu0 %v1084
        %1756 = vmatpush.bf16.msra.mxu0 %v1078
        %1757 = vmatpush.bf16.msra.mxu0 %v1072
        %1758 = vmatmul.bf16.gmra.mxu0 %v606
        %v1759 = vpop.f32.mrf.mxu0
        %v1760 = vadd.f32 %v1711, %v1759
        %v1761 = vpop.f32.mrf.mxu0
        %v1762 = vadd.f32 %v1713, %v1761
        %1763 = vmatmul.bf16.gmra.mxu0 %v608
        %v1764 = vpop.f32.mrf.mxu0
        %v1765 = vadd.f32 %v1716, %v1764
        %v1766 = vpop.f32.mrf.mxu0
        %v1767 = vadd.f32 %v1718, %v1766
        %1768 = vmatmul.bf16.gmra.mxu0 %v610
        %v1769 = vpop.f32.mrf.mxu0
        %v1770 = vadd.f32 %v1721, %v1769
        %v1771 = vpop.f32.mrf.mxu0
        %v1772 = vadd.f32 %v1723, %v1771
        %1773 = vmatmul.bf16.gmra.mxu0 %v612
        %v1774 = vpop.f32.mrf.mxu0
        %v1775 = vadd.f32 %v1726, %v1774
        %v1776 = vpop.f32.mrf.mxu0
        %v1777 = vadd.f32 %v1728, %v1776
        %1778 = vmatmul.bf16.gmra.mxu0 %v614
        %v1779 = vpop.f32.mrf.mxu0
        %v1780 = vadd.f32 %v1731, %v1779
        %v1781 = vpop.f32.mrf.mxu0
        %v1782 = vadd.f32 %v1733, %v1781
        %1783 = vmatmul.bf16.gmra.mxu0 %v616
        %v1784 = vpop.f32.mrf.mxu0
        %v1785 = vadd.f32 %v1736, %v1784
        %v1786 = vpop.f32.mrf.mxu0
        %v1787 = vadd.f32 %v1738, %v1786
        %1788 = vmatmul.bf16.gmra.mxu0 %v618
        %v1789 = vpop.f32.mrf.mxu0
        %v1790 = vadd.f32 %v1741, %v1789
        %v1791 = vpop.f32.mrf.mxu0
        %v1792 = vadd.f32 %v1743, %v1791
        %1793 = vmatmul.bf16.gmra.mxu0 %v620
        %v1794 = vpop.f32.mrf.mxu0
        %v1795 = vadd.f32 %v1746, %v1794
        %v1796 = vpop.f32.mrf.mxu0
        %v1797 = vadd.f32 %v1748, %v1796
        %1798 = vdwg.mxu0
        %1799 = vst [vmem:[%s306] sm:$0xff] %v1270
        %1800 = vst [vmem:[%s306 + $0x8] sm:$0xff] %v1368
        %1801 = vst [vmem:[%s306 + $0x10] sm:$0xff] %v1466
        %1802 = vst [vmem:[%s306 + $0x18] sm:$0xff] %v1564
        %1803 = vst [vmem:[%s306 + $0x20] sm:$0xff] %v1662
        %1804 = vst [vmem:[%s306 + $0x28] sm:$0xff] %v1760
        %1805 = vst [vmem:[%s306 + $0x30] sm:$0xff] %v1272
        %1806 = vst [vmem:[%s306 + $0x38] sm:$0xff] %v1370
        %1807 = vst [vmem:[%s306 + $0x40] sm:$0xff] %v1468
        %1808 = vst [vmem:[%s306 + $0x48] sm:$0xff] %v1566
        %1809 = vst [vmem:[%s306 + $0x50] sm:$0xff] %v1664
        %1810 = vst [vmem:[%s306 + $0x58] sm:$0xff] %v1762
        %1811 = vst [vmem:[%s306 + $0x60] sm:$0xff] %v1275
        %1812 = vst [vmem:[%s306 + $0x68] sm:$0xff] %v1373
        %1813 = vst [vmem:[%s306 + $0x70] sm:$0xff] %v1471
        %1814 = vst [vmem:[%s306 + $0x78] sm:$0xff] %v1569
        %1815 = vst [vmem:[%s306 + $0x80] sm:$0xff] %v1667
        %1816 = vst [vmem:[%s306 + $0x88] sm:$0xff] %v1765
        %1817 = vst [vmem:[%s306 + $0x90] sm:$0xff] %v1277
        %1818 = vst [vmem:[%s306 + $0x98] sm:$0xff] %v1375
        %1819 = vst [vmem:[%s306 + $0xa0] sm:$0xff] %v1473
        %1820 = vst [vmem:[%s306 + $0xa8] sm:$0xff] %v1571
        %1821 = vst [vmem:[%s306 + $0xb0] sm:$0xff] %v1669
        %1822 = vst [vmem:[%s306 + $0xb8] sm:$0xff] %v1767
        %1823 = vst [vmem:[%s306 + $0xc0] sm:$0xff] %v1280
        %1824 = vst [vmem:[%s306 + $0xc8] sm:$0xff] %v1378
        %1825 = vst [vmem:[%s306 + $0xd0] sm:$0xff] %v1476
        %1826 = vst [vmem:[%s306 + $0xd8] sm:$0xff] %v1574
        %1827 = vst [vmem:[%s306 + $0xe0] sm:$0xff] %v1672
        %1828 = vst [vmem:[%s306 + $0xe8] sm:$0xff] %v1770
        %1829 = vst [vmem:[%s306 + $0xf0] sm:$0xff] %v1282
        %1830 = vst [vmem:[%s306 + $0xf8] sm:$0xff] %v1380
        %1831 = vst [vmem:[%s306 + $0x100] sm:$0xff] %v1478
        %1832 = vst [vmem:[%s306 + $0x108] sm:$0xff] %v1576
        %1833 = vst [vmem:[%s306 + $0x110] sm:$0xff] %v1674
        %1834 = vst [vmem:[%s306 + $0x118] sm:$0xff] %v1772
        %1835 = vst [vmem:[%s306 + $0x120] sm:$0xff] %v1285
        %1836 = vst [vmem:[%s306 + $0x128] sm:$0xff] %v1383
        %1837 = vst [vmem:[%s306 + $0x130] sm:$0xff] %v1481
        %1838 = vst [vmem:[%s306 + $0x138] sm:$0xff] %v1579
        %1839 = vst [vmem:[%s306 + $0x140] sm:$0xff] %v1677
        %1840 = vst [vmem:[%s306 + $0x148] sm:$0xff] %v1775
        %1841 = vst [vmem:[%s306 + $0x150] sm:$0xff] %v1287
        %1842 = vst [vmem:[%s306 + $0x158] sm:$0xff] %v1385
        %1843 = vst [vmem:[%s306 + $0x160] sm:$0xff] %v1483
        %1844 = vst [vmem:[%s306 + $0x168] sm:$0xff] %v1581
        %1845 = vst [vmem:[%s306 + $0x170] sm:$0xff] %v1679
        %1846 = vst [vmem:[%s306 + $0x178] sm:$0xff] %v1777
        %1847 = vst [vmem:[%s306 + $0x180] sm:$0xff] %v1290
        %1848 = vst [vmem:[%s306 + $0x188] sm:$0xff] %v1388
        %1849 = vst [vmem:[%s306 + $0x190] sm:$0xff] %v1486
        %1850 = vst [vmem:[%s306 + $0x198] sm:$0xff] %v1584
        %1851 = vst [vmem:[%s306 + $0x1a0] sm:$0xff] %v1682
        %1852 = vst [vmem:[%s306 + $0x1a8] sm:$0xff] %v1780
        %1853 = vst [vmem:[%s306 + $0x1b0] sm:$0xff] %v1292
        %1854 = vst [vmem:[%s306 + $0x1b8] sm:$0xff] %v1390
        %1855 = vst [vmem:[%s306 + $0x1c0] sm:$0xff] %v1488
        %1856 = vst [vmem:[%s306 + $0x1c8] sm:$0xff] %v1586
        %1857 = vst [vmem:[%s306 + $0x1d0] sm:$0xff] %v1684
        %1858 = vst [vmem:[%s306 + $0x1d8] sm:$0xff] %v1782
        %1859 = vst [vmem:[%s306 + $0x1e0] sm:$0xff] %v1295
        %1860 = vst [vmem:[%s306 + $0x1e8] sm:$0xff] %v1393
        %1861 = vst [vmem:[%s306 + $0x1f0] sm:$0xff] %v1491
        %1862 = vst [vmem:[%s306 + $0x1f8] sm:$0xff] %v1589
        %1863 = vst [vmem:[%s306 + $0x200] sm:$0xff] %v1687
        %1864 = vst [vmem:[%s306 + $0x208] sm:$0xff] %v1785
        %1865 = vst [vmem:[%s306 + $0x210] sm:$0xff] %v1297
        %1866 = vst [vmem:[%s306 + $0x218] sm:$0xff] %v1395
        %1867 = vst [vmem:[%s306 + $0x220] sm:$0xff] %v1493
        %1868 = vst [vmem:[%s306 + $0x228] sm:$0xff] %v1591
        %1869 = vst [vmem:[%s306 + $0x230] sm:$0xff] %v1689
        %1870 = vst [vmem:[%s306 + $0x238] sm:$0xff] %v1787
        %1871 = vst [vmem:[%s306 + $0x240] sm:$0xff] %v1300
        %1872 = vst [vmem:[%s306 + $0x248] sm:$0xff] %v1398
        %1873 = vst [vmem:[%s306 + $0x250] sm:$0xff] %v1496
        %1874 = vst [vmem:[%s306 + $0x258] sm:$0xff] %v1594
        %1875 = vst [vmem:[%s306 + $0x260] sm:$0xff] %v1692
        %1876 = vst [vmem:[%s306 + $0x268] sm:$0xff] %v1790
        %1877 = vst [vmem:[%s306 + $0x270] sm:$0xff] %v1302
        %1878 = vst [vmem:[%s306 + $0x278] sm:$0xff] %v1400
        %1879 = vst [vmem:[%s306 + $0x280] sm:$0xff] %v1498
        %1880 = vst [vmem:[%s306 + $0x288] sm:$0xff] %v1596
        %1881 = vst [vmem:[%s306 + $0x290] sm:$0xff] %v1694
        %1882 = vst [vmem:[%s306 + $0x298] sm:$0xff] %v1792
        %1883 = vst [vmem:[%s306 + $0x2a0] sm:$0xff] %v1305
        %1884 = vst [vmem:[%s306 + $0x2a8] sm:$0xff] %v1403
        %1885 = vst [vmem:[%s306 + $0x2b0] sm:$0xff] %v1501
        %1886 = vst [vmem:[%s306 + $0x2b8] sm:$0xff] %v1599
        %1887 = vst [vmem:[%s306 + $0x2c0] sm:$0xff] %v1697
        %1888 = vst [vmem:[%s306 + $0x2c8] sm:$0xff] %v1795
        %1889 = vst [vmem:[%s306 + $0x2d0] sm:$0xff] %v1307
        %1890 = vst [vmem:[%s306 + $0x2d8] sm:$0xff] %v1405
        %1891 = vst [vmem:[%s306 + $0x2e0] sm:$0xff] %v1503
        %1892 = vst [vmem:[%s306 + $0x2e8] sm:$0xff] %v1601
        %1893 = vst [vmem:[%s306 + $0x2f0] sm:$0xff] %v1699
        %1894 = vst [vmem:[%s306 + $0x2f8] sm:$0xff] %v1797
        %s1895 = sand.u32 %s142, 1
        %s1896 = scalar_lea.sflag [#allocation4], %s1895
        %s1897 = sand.u32 %s142, 1
        %s1898 = smul.addr %s1897, 768
        %s1899 = scalar_lea.vmem [#allocation11], %s1898
        // Predicated region
        $region61: #{tpu_custom_call.1} parent=39 // pred_check
          %p1900 = pneg %p152
        $region62: #{tpu_custom_call.1} parent=39 // pred_check_branch
          %1902 = sbr.rel (%p1900) target = $region64
        $region63: #{tpu_custom_call.1} parent=39 // pred_region
          %s1903 = smul.u32 16, %s24
          %1905 = vsyncadd %s1896, 0
          %s1906 = smul.addr %s1903, 6
          %s1907 = smul.addr %s1906, 8
          %s1908 = scalar_lea.hbm %s5, %s1907
          %s1909 = sshll.u32 %s1899, 4
          %s1910 = int_to_ptr.vmem [resolvable:$true] %s1909
          %s1911 = sshll.u32 %s1908, 4
          %s1912 = int_to_ptr.hbm [resolvable:$true] %s1911
          %1917 = dma.vmem_to_hbm [thread:$0]  %s1910, 12288, %s1912, %s1896, 768, 768, 48
        $region64: #{tpu_custom_call.1} parent=39 // pred_fallthru
          _
      $region40: #{tpu_custom_call.1} parent=5 // pred_fallthru
        _
      %p1918 = scmp.le.s32.totalorder 2, %s19
      // Predicated region
      $region65: #{tpu_custom_call.1} parent=5 // pred_check
        %p1919 = pneg %p1918
      $region66: #{tpu_custom_call.1} parent=5 // pred_check_branch
        %1921 = sbr.rel (%p1919) target = $region68
      $region67: #{tpu_custom_call.1} parent=5 // pred_region
        %s1922 = ssub.s32 %s19, 2
        // Predicated region
        $region69: #{tpu_custom_call.1} parent=67 // pred_check
          %p1923 = pneg %p158
        $region70: #{tpu_custom_call.1} parent=67 // pred_check_branch
          %1925 = sbr.rel (%p1923) target = $region72
        $region71: #{tpu_custom_call.1} parent=67 // pred_region
          %s1926 = sand.u32 %s143, 1
          %s1927 = scalar_lea.sflag [#allocation4], %s1926
          %s1928 = sand.u32 %s143, 1
          %s1929 = smul.addr %s1928, 768
          %s1930 = scalar_lea.vmem [#allocation11], %s1929
          %1932 = dma.done %s1927, 12288
        $region72: #{tpu_custom_call.1} parent=67 // pred_fallthru
          _
      $region68: #{tpu_custom_call.1} parent=5 // pred_fallthru
        _
    $region6: #{tpu_custom_call.1} parent=1 // loop_footer
      %s23 = sadd.s32 1, %s19
    $region7: #{tpu_custom_call.1} parent=1 // loop_footer_branch
      %18 = sbr.rel target = $region3
    $region8: #{tpu_custom_call.1} parent=1 // loop_exit
      _
    %1933 = vsyncpa [#allocation3], 1
    %s1934 = scalar_lea.sflag [#allocation3], 1
    %1935 = vsyncpa %s1934, 1
    %1936 = vsyncpa [#allocation6], 1
    %1937 = vsyncpa [#allocation9], 1
    %1938 = vsyncpa [#allocation4], 1
    %s1939 = scalar_lea.sflag [#allocation4], 1
    %1940 = vsyncpa %s1939, 1

</llo_original>
